<compile_context>
chip_gen: v7x
topology: tpu7x:2x2x1
jax: 0.10.0
libtpu: 0.0.40
codegen_flags: <defaults>
</compile_context>

<pallas_src>
import functools

import numpy as np
import jax
import jax.numpy as jnp
from jax.experimental import pallas as pl
from jax.experimental.pallas import tpu as pltpu


def cbam_kernel(x_ref, w_fc_ref, b_fc_ref, mask_ref, w_sa_ref, o_ref, *,
                H, W, ksize):
    # x_ref   : (bt, C, H*W)   lane-dense input block (native dtype)
    # w_fc_ref: (C, C)         1x1-conv weight, PRE-TRANSPOSED (C_in, C_out)
    # b_fc_ref: (1, C)         1x1-conv bias
    # mask_ref: (K, H*W)       column-validity masks, one row per horiz. tap
    # w_sa_ref: (2*K*K,) SMEM  spatial-conv taps: [mean taps..., max taps...]
    x = x_ref[...]                                   # native dtype
    bt, C, HW = x.shape
    K, K2, p = ksize, ksize * ksize, ksize // 2

    # ---------------- Channel attention ----------------
    # f32-accumulating reduce (no full f32 copy of the block for bf16 inputs).
    pool = jnp.sum(x, axis=-1, dtype=jnp.float32) / HW            # (bt, C)
    w_fc_t = w_fc_ref[...].astype(jnp.float32)                    # (C_in, C_out)
    b_fc = b_fc_ref[...].astype(jnp.float32)                      # (1, C)
    if C >= 128:
        # MXU-shaped matmul; weight already transposed, no in-kernel .T.
        logits = jnp.dot(pool, w_fc_t,
                         preferred_element_type=jnp.float32) + b_fc
    else:
        # Tiny matvec: keep it on the VPU (broadcast-multiply + reduce).
        logits = jnp.sum(pool[:, :, None] * w_fc_t[None, :, :], axis=1) + b_fc
    ca = jax.nn.sigmoid(logits).astype(x.dtype)                   # (bt, C)
    x_ca = x * ca[:, :, None]                                     # (bt, C, HW), kept live

    # ---------------- Spatial attention ----------------
    # Channel stats with f32 accumulation (no f32 block copy).
    mean_c = jnp.sum(x_ca, axis=1, dtype=jnp.float32) / C         # (bt, HW)
    max_c = jnp.max(x_ca, axis=1).astype(jnp.float32)             # (bt, HW)

    # Stack mean/max along the sublane axis: each conv tap becomes a single
    # FMA over fuller vregs (halves tap-loop instruction count for small bt).
    stats = jnp.concatenate([mean_c, max_c], axis=0)              # (2bt, HW) f32
    edge = p * W + p
    stats_p = jnp.pad(stats, ((0, 0), (edge, edge)))              # (2bt, HW+2*edge)

    # First bt rows use the mean-channel taps, last bt rows the max-channel taps.
    row = jax.lax.broadcasted_iota(jnp.int32, (2 * bt, 1), 0)
    is_max = row >= bt                                            # (2bt, 1) bool

    # Hoist all SMEM scalar reads out of the unrolled tap loop.
    wm = [w_sa_ref[t] for t in range(K2)]            # mean-channel taps
    wx = [w_sa_ref[K2 + t] for t in range(K2)]       # max-channel taps

    # KxK "same" conv with zero padding, computed directly in the flattened
    # row-major layout: horizontal offsets outer, vertical taps are static
    # slices of the padded flat array summed first; the row-boundary mask is
    # applied ONCE per horizontal offset afterwards (mask is periodic in W,
    # so masking after the kh-sum is mathematically identical).
    # TODO(synk): for W within ~2x of a multiple of 128, pad the row stride to
    # 128 so vertical-tap offsets become lane-aligned (fewer XLU rotations).
    acc = None
    for kw in range(K):
        dw = kw - p
        partial = None
        for kh in range(K):
            t = kh * K + kw
            w_col = jnp.where(is_max, wx[t], wm[t])               # (2bt, 1)
            start = p + dw + kh * W
            term = w_col * stats_p[:, start:start + HW]
            partial = term if partial is None else partial + term
        masked = mask_ref[kw:kw + 1, :] * partial
        acc = masked if acc is None else acc + masked

    sa = jax.nn.sigmoid(acc[:bt, :] + acc[bt:, :]).astype(x.dtype)  # (bt, HW)

    # x_ca stays live: lane-dense store, no recompute of x*ca.
    o_ref[...] = (x_ca * sa[:, None, :]).astype(o_ref.dtype)


def _pick_block_batch(batch, per_batch_bytes, target_bytes=2 << 20):
    """Largest batch block whose input bytes stay under ~2 MiB: big enough to
    sit near the HBM roofline and amortize the ~0.35us/step grid overhead,
    small enough that ~4x pipelined I/O buffers + ~2-3x f32 in-body temps stay
    well inside v7x's 64 MiB VMEM.  Always prefer >= 2 grid steps when B
    allows (DMA/compute pipeline overlap; the 'parallel' axis can then shard
    over v7x's 2 TensorCores)."""
    bt = max(1, min(batch, target_bytes // max(per_batch_bytes, 1)))
    if batch >= 2:
        bt = min(bt, pl.cdiv(batch, 2))   # guarantee at least 2 grid steps
    return bt


def cbam_pallas(x, w_fc, b_fc, w_sa):
    """x: (B, C, H, W); w_fc: (C, C); b_fc: (C, 1); w_sa: (2, k, k)."""
    B, C, H, W = x.shape
    ksize = w_sa.shape[-1]
    p = ksize // 2
    HW = H * W

    # Lane-dense layout: last dim H*W instead of W.
    x_flat = x.reshape(B, C, HW)
    # Transpose the 1x1-conv weight ONCE on the host (constant weight; avoids
    # an in-kernel XLU/relayout every grid step).
    w_fc_t = jnp.transpose(w_fc)                                 # (C_in, C_out)
    b_row = b_fc.reshape(1, C)
    # Taps flattened for SMEM scalar reads: [mean taps (k*k), max taps (k*k)].
    w_sa_flat = w_sa.reshape(-1)

    # Static column-validity masks (one per horizontal tap offset), built
    # host-side: zero out taps that would cross a row boundary in flat layout.
    col = np.arange(HW) % W
    masks = np.stack(
        [((col + dw >= 0) & (col + dw < W)) for dw in range(-p, p + 1)]
    ).astype(np.float32)                                         # (k, HW)

    bt = _pick_block_batch(B, C * HW * x.dtype.itemsize)
    n_blocks = pl.cdiv(B, bt)
    B_pad = n_blocks * bt
    if B_pad != B:
        # Non-divisible B: pad with zeros (each batch element is independent;
        # the padded rows compute garbage-free values and are sliced off).
        x_flat = jnp.pad(x_flat, ((0, B_pad - B), (0, 0), (0, 0)))
    # TODO(synk): for very large C*H*W (v7x 64 MiB VMEM) add a spatial grid
    # axis with a two-pass pooled accumulator instead of whole-map blocks.

    out = pl.pallas_call(
        functools.partial(cbam_kernel, H=H, W=W, ksize=ksize),
        out_shape=jax.ShapeDtypeStruct((B_pad, C, HW), x.dtype),
        grid=(n_blocks,),
        in_specs=[
            pl.BlockSpec((bt, C, HW), lambda b: (b, 0, 0)),
            pl.BlockSpec((C, C), lambda b: (0, 0)),
            pl.BlockSpec((1, C), lambda b: (0, 0)),
            pl.BlockSpec((ksize, HW), lambda b: (0, 0)),
            pl.BlockSpec(memory_space=pltpu.MemorySpace.SMEM),
        ],
        out_specs=pl.BlockSpec((bt, C, HW), lambda b: (b, 0, 0)),
        compiler_params=pltpu.CompilerParams(
            dimension_semantics=("parallel",),
            # Explicit budget: above v5e's 16 MiB default scoped limit, below
            # v7x's 64 MiB physical; ~2 MiB blocks x (4 I/O bufs + f32 temps)
            # leaves ample headroom.
            vmem_limit_bytes=48 << 20),
    )(x_flat, w_fc_t, b_row, jnp.asarray(masks), w_sa_flat)

    out = out.reshape(B_pad, C, H, W)
    return out[:B] if B_pad != B else out


def cbam_reference(x, w_fc, b_fc, w_sa):
    """Pure-JAX reference matching the PyTorch CBAM forward."""
    # Channel attention
    pool = jnp.mean(x, axis=(2, 3))                       # (B, C)
    logits = pool @ w_fc.T + b_fc[:, 0][None, :]          # (B, C)
    x_ca = x * jax.nn.sigmoid(logits)[:, :, None, None]
    # Spatial attention
    mean_c = jnp.mean(x_ca, axis=1, keepdims=True)
    max_c = jnp.max(x_ca, axis=1, keepdims=True)
    stats = jnp.concatenate([mean_c, max_c], axis=1)      # (B, 2, H, W)
    pad = w_sa.shape[-1] // 2
    sa = jax.lax.conv_general_dilated(
        stats, w_sa[None],                                # (1, 2, k, k)
        window_strides=(1, 1), padding=((pad, pad), (pad, pad)),
        dimension_numbers=("NCHW", "OIHW", "NCHW"))
    return x_ca * jax.nn.sigmoid(sa)


if __name__ == "__main__":
    B, C, H, W = 2, 4, 16, 16
    KSIZE = 7

    key = jax.random.PRNGKey(0)
    kx, kw1, kb1, kw2 = jax.random.split(key, 4)

    x = jax.random.normal(kx, (B, C, H, W), dtype=jnp.float32)
    # ChannelAttention.fc: Conv2d(C, C, 1, bias=True) -> weight (C, C), bias (C, 1)
    w_fc = 0.1 * jax.random.normal(kw1, (C, C), dtype=jnp.float32)
    b_fc = 0.1 * jax.random.normal(kb1, (C, 1), dtype=jnp.float32)
    # SpatialAttention.cv1: Conv2d(2, 1, 7, padding=3, bias=False) -> weight (2, 7, 7)
    w_sa = 0.1 * jax.random.normal(kw2, (2, KSIZE, KSIZE), dtype=jnp.float32)

    out = cbam_pallas(x, w_fc, b_fc, w_sa)
    out = jax.block_until_ready(out)

    ref = cbam_reference(x, w_fc, b_fc, w_sa)
    assert out.shape == ref.shape and out.dtype == ref.dtype
    assert jnp.allclose(out, ref, atol=1e-5, rtol=1e-5), (
        float(jnp.max(jnp.abs(out - ref))))

    print("KERNEL_OK")
</pallas_src>

<mosaic_0001>
module attributes {stable_mosaic.version = 11 : i64} {
  func.func @cbam_kernel(%arg0: i32, %arg1: memref<1x4x256xf32, #tpu.memory_space<vmem>>, %arg2: memref<4x4xf32, #tpu.memory_space<vmem>>, %arg3: memref<1x4xf32, #tpu.memory_space<vmem>>, %arg4: memref<7x256xf32, #tpu.memory_space<vmem>>, %arg5: memref<98xf32, #tpu.memory_space<smem>>, %arg6: memref<1x4x256xf32, #tpu.memory_space<vmem>>) attributes {dimension_semantics = [#tpu.dimension_semantics<parallel>], iteration_bounds = array<i64: 2>, scalar_prefetch = 0 : i64, scratch_operands = 0 : i64, tpu.core_type = #tpu.core_type<tc>, window_params = [{transform_indices = @transform_0, window_bounds = array<i64: 1, 4, 256>}, {pipeline_mode = #tpu.pipeline_mode<synchronous>, transform_indices = @transform_1, window_bounds = array<i64: 4, 4>}, {pipeline_mode = #tpu.pipeline_mode<synchronous>, transform_indices = @transform_2, window_bounds = array<i64: 1, 4>}, {pipeline_mode = #tpu.pipeline_mode<synchronous>, transform_indices = @transform_3, window_bounds = array<i64: 7, 256>}, {transform_indices = @transform_4, window_bounds = array<i64: 98>}, {transform_indices = @transform_5, window_bounds = array<i64: 1, 4, 256>}]} {
    %c0 = arith.constant 0 : index
    %c0_0 = arith.constant 0 : index
    %c0_1 = arith.constant 0 : index
    %0 = vector.load %arg1[%c0, %c0_0, %c0_1] : memref<1x4x256xf32, #tpu.memory_space<vmem>>, vector<1x4x256xf32>
    %cst = arith.constant dense<0.000000e+00> : vector<1x4xf32>
    %1 = vector.multi_reduction <add>, %0, %cst [2] : vector<1x4x256xf32> to vector<1x4xf32>
    %cst_2 = arith.constant 2.560000e+02 : f32
    %2 = vector.broadcast %cst_2 : f32 to vector<1x4xf32>
    %3 = arith.divf %1, %2 : vector<1x4xf32>
    %c0_3 = arith.constant 0 : index
    %c0_4 = arith.constant 0 : index
    %4 = vector.load %arg2[%c0_3, %c0_4] : memref<4x4xf32, #tpu.memory_space<vmem>>, vector<4x4xf32>
    %c0_5 = arith.constant 0 : index
    %c0_6 = arith.constant 0 : index
    %5 = vector.load %arg3[%c0_5, %c0_6] : memref<1x4xf32, #tpu.memory_space<vmem>>, vector<1x4xf32>
    %6 = vector.shape_cast %3 : vector<1x4xf32> to vector<1x4x1xf32>
    %7 = vector.shape_cast %4 : vector<4x4xf32> to vector<1x4x4xf32>
    %8 = vector.broadcast %6 : vector<1x4x1xf32> to vector<1x4x4xf32>
    %9 = arith.mulf %8, %7 : vector<1x4x4xf32>
    %cst_7 = arith.constant dense<0.000000e+00> : vector<1x4xf32>
    %10 = vector.multi_reduction <add>, %9, %cst_7 [1] : vector<1x4x4xf32> to vector<1x4xf32>
    %11 = arith.addf %10, %5 : vector<1x4xf32>
    %12 = arith.negf %11 : vector<1x4xf32>
    %13 = math.exp %12 : vector<1x4xf32>
    %cst_8 = arith.constant 1.000000e+00 : f32
    %14 = vector.broadcast %cst_8 : f32 to vector<1x4xf32>
    %15 = arith.addf %14, %13 : vector<1x4xf32>
    %16 = arith.divf %14, %15 : vector<1x4xf32>
    %17 = vector.shape_cast %16 : vector<1x4xf32> to vector<1x4x1xf32>
    %18 = vector.broadcast %17 : vector<1x4x1xf32> to vector<1x4x256xf32>
    %19 = arith.mulf %0, %18 : vector<1x4x256xf32>
    %cst_9 = arith.constant dense<0.000000e+00> : vector<1x256xf32>
    %20 = vector.multi_reduction <add>, %19, %cst_9 [1] : vector<1x4x256xf32> to vector<1x256xf32>
    %cst_10 = arith.constant 4.000000e+00 : f32
    %21 = vector.broadcast %cst_10 : f32 to vector<1x256xf32>
    %22 = arith.divf %20, %21 : vector<1x256xf32>
    %cst_11 = arith.constant dense<0xFF800000> : vector<1x256xf32>
    %23 = vector.multi_reduction <maximumf>, %19, %cst_11 [1] : vector<1x4x256xf32> to vector<1x256xf32>
    %24 = tpu.concatenate %22, %23 in 0 : vector<1x256xf32>, vector<1x256xf32> -> vector<2x256xf32>
    %c0_i32 = arith.constant 0 : i32
    %25 = arith.sitofp %c0_i32 : i32 to f32
    %26 = vector.broadcast %25 : f32 to vector<2x51xf32>
    %27 = tpu.concatenate %26, %24 in 1 : vector<2x51xf32>, vector<2x256xf32> -> vector<2x307xf32>
    %28 = vector.broadcast %25 : f32 to vector<2x51xf32>
    %29 = tpu.concatenate %27, %28 in 1 : vector<2x307xf32>, vector<2x51xf32> -> vector<2x358xf32>
    %30 = tpu.iota {dimensions = array<i32: 0>} : vector<2x1xi32>
    %c1_i32 = arith.constant 1 : i32
    %31 = vector.broadcast %c1_i32 : i32 to vector<2x1xi32>
    %32 = arith.cmpi sge, %30, %31 : vector<2x1xi32>
    %c0_12 = arith.constant 0 : index
    %33 = memref.load %arg5[%c0_12] : memref<98xf32, #tpu.memory_space<smem>>
    %c1 = arith.constant 1 : index
    %34 = memref.load %arg5[%c1] : memref<98xf32, #tpu.memory_space<smem>>
    %c2 = arith.constant 2 : index
    %35 = memref.load %arg5[%c2] : memref<98xf32, #tpu.memory_space<smem>>
    %c3 = arith.constant 3 : index
    %36 = memref.load %arg5[%c3] : memref<98xf32, #tpu.memory_space<smem>>
    %c4 = arith.constant 4 : index
    %37 = memref.load %arg5[%c4] : memref<98xf32, #tpu.memory_space<smem>>
    %c5 = arith.constant 5 : index
    %38 = memref.load %arg5[%c5] : memref<98xf32, #tpu.memory_space<smem>>
    %c6 = arith.constant 6 : index
    %39 = memref.load %arg5[%c6] : memref<98xf32, #tpu.memory_space<smem>>
    %c7 = arith.constant 7 : index
    %40 = memref.load %arg5[%c7] : memref<98xf32, #tpu.memory_space<smem>>
    %c8 = arith.constant 8 : index
    %41 = memref.load %arg5[%c8] : memref<98xf32, #tpu.memory_space<smem>>
    %c9 = arith.constant 9 : index
    %42 = memref.load %arg5[%c9] : memref<98xf32, #tpu.memory_space<smem>>
    %c10 = arith.constant 10 : index
    %43 = memref.load %arg5[%c10] : memref<98xf32, #tpu.memory_space<smem>>
    %c11 = arith.constant 11 : index
    %44 = memref.load %arg5[%c11] : memref<98xf32, #tpu.memory_space<smem>>
    %c12 = arith.constant 12 : index
    %45 = memref.load %arg5[%c12] : memref<98xf32, #tpu.memory_space<smem>>
    %c13 = arith.constant 13 : index
    %46 = memref.load %arg5[%c13] : memref<98xf32, #tpu.memory_space<smem>>
    %c14 = arith.constant 14 : index
    %47 = memref.load %arg5[%c14] : memref<98xf32, #tpu.memory_space<smem>>
    %c15 = arith.constant 15 : index
    %48 = memref.load %arg5[%c15] : memref<98xf32, #tpu.memory_space<smem>>
    %c16 = arith.constant 16 : index
    %49 = memref.load %arg5[%c16] : memref<98xf32, #tpu.memory_space<smem>>
    %c17 = arith.constant 17 : index
    %50 = memref.load %arg5[%c17] : memref<98xf32, #tpu.memory_space<smem>>
    %c18 = arith.constant 18 : index
    %51 = memref.load %arg5[%c18] : memref<98xf32, #tpu.memory_space<smem>>
    %c19 = arith.constant 19 : index
    %52 = memref.load %arg5[%c19] : memref<98xf32, #tpu.memory_space<smem>>
    %c20 = arith.constant 20 : index
    %53 = memref.load %arg5[%c20] : memref<98xf32, #tpu.memory_space<smem>>
    %c21 = arith.constant 21 : index
    %54 = memref.load %arg5[%c21] : memref<98xf32, #tpu.memory_space<smem>>
    %c22 = arith.constant 22 : index
    %55 = memref.load %arg5[%c22] : memref<98xf32, #tpu.memory_space<smem>>
    %c23 = arith.constant 23 : index
    %56 = memref.load %arg5[%c23] : memref<98xf32, #tpu.memory_space<smem>>
    %c24 = arith.constant 24 : index
    %57 = memref.load %arg5[%c24] : memref<98xf32, #tpu.memory_space<smem>>
    %c25 = arith.constant 25 : index
    %58 = memref.load %arg5[%c25] : memref<98xf32, #tpu.memory_space<smem>>
    %c26 = arith.constant 26 : index
    %59 = memref.load %arg5[%c26] : memref<98xf32, #tpu.memory_space<smem>>
    %c27 = arith.constant 27 : index
    %60 = memref.load %arg5[%c27] : memref<98xf32, #tpu.memory_space<smem>>
    %c28 = arith.constant 28 : index
    %61 = memref.load %arg5[%c28] : memref<98xf32, #tpu.memory_space<smem>>
    %c29 = arith.constant 29 : index
    %62 = memref.load %arg5[%c29] : memref<98xf32, #tpu.memory_space<smem>>
    %c30 = arith.constant 30 : index
    %63 = memref.load %arg5[%c30] : memref<98xf32, #tpu.memory_space<smem>>
    %c31 = arith.constant 31 : index
    %64 = memref.load %arg5[%c31] : memref<98xf32, #tpu.memory_space<smem>>
    %c32 = arith.constant 32 : index
    %65 = memref.load %arg5[%c32] : memref<98xf32, #tpu.memory_space<smem>>
    %c33 = arith.constant 33 : index
    %66 = memref.load %arg5[%c33] : memref<98xf32, #tpu.memory_space<smem>>
    %c34 = arith.constant 34 : index
    %67 = memref.load %arg5[%c34] : memref<98xf32, #tpu.memory_space<smem>>
    %c35 = arith.constant 35 : index
    %68 = memref.load %arg5[%c35] : memref<98xf32, #tpu.memory_space<smem>>
    %c36 = arith.constant 36 : index
    %69 = memref.load %arg5[%c36] : memref<98xf32, #tpu.memory_space<smem>>
    %c37 = arith.constant 37 : index
    %70 = memref.load %arg5[%c37] : memref<98xf32, #tpu.memory_space<smem>>
    %c38 = arith.constant 38 : index
    %71 = memref.load %arg5[%c38] : memref<98xf32, #tpu.memory_space<smem>>
    %c39 = arith.constant 39 : index
    %72 = memref.load %arg5[%c39] : memref<98xf32, #tpu.memory_space<smem>>
    %c40 = arith.constant 40 : index
    %73 = memref.load %arg5[%c40] : memref<98xf32, #tpu.memory_space<smem>>
    %c41 = arith.constant 41 : index
    %74 = memref.load %arg5[%c41] : memref<98xf32, #tpu.memory_space<smem>>
    %c42 = arith.constant 42 : index
    %75 = memref.load %arg5[%c42] : memref<98xf32, #tpu.memory_space<smem>>
    %c43 = arith.constant 43 : index
    %76 = memref.load %arg5[%c43] : memref<98xf32, #tpu.memory_space<smem>>
    %c44 = arith.constant 44 : index
    %77 = memref.load %arg5[%c44] : memref<98xf32, #tpu.memory_space<smem>>
    %c45 = arith.constant 45 : index
    %78 = memref.load %arg5[%c45] : memref<98xf32, #tpu.memory_space<smem>>
    %c46 = arith.constant 46 : index
    %79 = memref.load %arg5[%c46] : memref<98xf32, #tpu.memory_space<smem>>
    %c47 = arith.constant 47 : index
    %80 = memref.load %arg5[%c47] : memref<98xf32, #tpu.memory_space<smem>>
    %c48 = arith.constant 48 : index
    %81 = memref.load %arg5[%c48] : memref<98xf32, #tpu.memory_space<smem>>
    %c49 = arith.constant 49 : index
    %82 = memref.load %arg5[%c49] : memref<98xf32, #tpu.memory_space<smem>>
    %c50 = arith.constant 50 : index
    %83 = memref.load %arg5[%c50] : memref<98xf32, #tpu.memory_space<smem>>
    %c51 = arith.constant 51 : index
    %84 = memref.load %arg5[%c51] : memref<98xf32, #tpu.memory_space<smem>>
    %c52 = arith.constant 52 : index
    %85 = memref.load %arg5[%c52] : memref<98xf32, #tpu.memory_space<smem>>
    %c53 = arith.constant 53 : index
    %86 = memref.load %arg5[%c53] : memref<98xf32, #tpu.memory_space<smem>>
    %c54 = arith.constant 54 : index
    %87 = memref.load %arg5[%c54] : memref<98xf32, #tpu.memory_space<smem>>
    %c55 = arith.constant 55 : index
    %88 = memref.load %arg5[%c55] : memref<98xf32, #tpu.memory_space<smem>>
    %c56 = arith.constant 56 : index
    %89 = memref.load %arg5[%c56] : memref<98xf32, #tpu.memory_space<smem>>
    %c57 = arith.constant 57 : index
    %90 = memref.load %arg5[%c57] : memref<98xf32, #tpu.memory_space<smem>>
    %c58 = arith.constant 58 : index
    %91 = memref.load %arg5[%c58] : memref<98xf32, #tpu.memory_space<smem>>
    %c59 = arith.constant 59 : index
    %92 = memref.load %arg5[%c59] : memref<98xf32, #tpu.memory_space<smem>>
    %c60 = arith.constant 60 : index
    %93 = memref.load %arg5[%c60] : memref<98xf32, #tpu.memory_space<smem>>
    %c61 = arith.constant 61 : index
    %94 = memref.load %arg5[%c61] : memref<98xf32, #tpu.memory_space<smem>>
    %c62 = arith.constant 62 : index
    %95 = memref.load %arg5[%c62] : memref<98xf32, #tpu.memory_space<smem>>
    %c63 = arith.constant 63 : index
    %96 = memref.load %arg5[%c63] : memref<98xf32, #tpu.memory_space<smem>>
    %c64 = arith.constant 64 : index
    %97 = memref.load %arg5[%c64] : memref<98xf32, #tpu.memory_space<smem>>
    %c65 = arith.constant 65 : index
    %98 = memref.load %arg5[%c65] : memref<98xf32, #tpu.memory_space<smem>>
    %c66 = arith.constant 66 : index
    %99 = memref.load %arg5[%c66] : memref<98xf32, #tpu.memory_space<smem>>
    %c67 = arith.constant 67 : index
    %100 = memref.load %arg5[%c67] : memref<98xf32, #tpu.memory_space<smem>>
    %c68 = arith.constant 68 : index
    %101 = memref.load %arg5[%c68] : memref<98xf32, #tpu.memory_space<smem>>
    %c69 = arith.constant 69 : index
    %102 = memref.load %arg5[%c69] : memref<98xf32, #tpu.memory_space<smem>>
    %c70 = arith.constant 70 : index
    %103 = memref.load %arg5[%c70] : memref<98xf32, #tpu.memory_space<smem>>
    %c71 = arith.constant 71 : index
    %104 = memref.load %arg5[%c71] : memref<98xf32, #tpu.memory_space<smem>>
    %c72 = arith.constant 72 : index
    %105 = memref.load %arg5[%c72] : memref<98xf32, #tpu.memory_space<smem>>
    %c73 = arith.constant 73 : index
    %106 = memref.load %arg5[%c73] : memref<98xf32, #tpu.memory_space<smem>>
    %c74 = arith.constant 74 : index
    %107 = memref.load %arg5[%c74] : memref<98xf32, #tpu.memory_space<smem>>
    %c75 = arith.constant 75 : index
    %108 = memref.load %arg5[%c75] : memref<98xf32, #tpu.memory_space<smem>>
    %c76 = arith.constant 76 : index
    %109 = memref.load %arg5[%c76] : memref<98xf32, #tpu.memory_space<smem>>
    %c77 = arith.constant 77 : index
    %110 = memref.load %arg5[%c77] : memref<98xf32, #tpu.memory_space<smem>>
    %c78 = arith.constant 78 : index
    %111 = memref.load %arg5[%c78] : memref<98xf32, #tpu.memory_space<smem>>
    %c79 = arith.constant 79 : index
    %112 = memref.load %arg5[%c79] : memref<98xf32, #tpu.memory_space<smem>>
    %c80 = arith.constant 80 : index
    %113 = memref.load %arg5[%c80] : memref<98xf32, #tpu.memory_space<smem>>
    %c81 = arith.constant 81 : index
    %114 = memref.load %arg5[%c81] : memref<98xf32, #tpu.memory_space<smem>>
    %c82 = arith.constant 82 : index
    %115 = memref.load %arg5[%c82] : memref<98xf32, #tpu.memory_space<smem>>
    %c83 = arith.constant 83 : index
    %116 = memref.load %arg5[%c83] : memref<98xf32, #tpu.memory_space<smem>>
    %c84 = arith.constant 84 : index
    %117 = memref.load %arg5[%c84] : memref<98xf32, #tpu.memory_space<smem>>
    %c85 = arith.constant 85 : index
    %118 = memref.load %arg5[%c85] : memref<98xf32, #tpu.memory_space<smem>>
    %c86 = arith.constant 86 : index
    %119 = memref.load %arg5[%c86] : memref<98xf32, #tpu.memory_space<smem>>
    %c87 = arith.constant 87 : index
    %120 = memref.load %arg5[%c87] : memref<98xf32, #tpu.memory_space<smem>>
    %c88 = arith.constant 88 : index
    %121 = memref.load %arg5[%c88] : memref<98xf32, #tpu.memory_space<smem>>
    %c89 = arith.constant 89 : index
    %122 = memref.load %arg5[%c89] : memref<98xf32, #tpu.memory_space<smem>>
    %c90 = arith.constant 90 : index
    %123 = memref.load %arg5[%c90] : memref<98xf32, #tpu.memory_space<smem>>
    %c91 = arith.constant 91 : index
    %124 = memref.load %arg5[%c91] : memref<98xf32, #tpu.memory_space<smem>>
    %c92 = arith.constant 92 : index
    %125 = memref.load %arg5[%c92] : memref<98xf32, #tpu.memory_space<smem>>
    %c93 = arith.constant 93 : index
    %126 = memref.load %arg5[%c93] : memref<98xf32, #tpu.memory_space<smem>>
    %c94 = arith.constant 94 : index
    %127 = memref.load %arg5[%c94] : memref<98xf32, #tpu.memory_space<smem>>
    %c95 = arith.constant 95 : index
    %128 = memref.load %arg5[%c95] : memref<98xf32, #tpu.memory_space<smem>>
    %c96 = arith.constant 96 : index
    %129 = memref.load %arg5[%c96] : memref<98xf32, #tpu.memory_space<smem>>
    %c97 = arith.constant 97 : index
    %130 = memref.load %arg5[%c97] : memref<98xf32, #tpu.memory_space<smem>>
    %131 = vector.broadcast %82 : f32 to vector<2x1xf32>
    %132 = vector.broadcast %33 : f32 to vector<2x1xf32>
    %133 = arith.select %32, %131, %132 : vector<2x1xi1>, vector<2x1xf32>
    %134 = vector.extract_strided_slice %29 {offsets = [0, 0], sizes = [2, 256], strides = [1, 1]} : vector<2x358xf32> to vector<2x256xf32>
    %135 = vector.broadcast %133 : vector<2x1xf32> to vector<2x256xf32>
    %136 = arith.mulf %135, %134 : vector<2x256xf32>
    %137 = vector.broadcast %89 : f32 to vector<2x1xf32>
    %138 = vector.broadcast %40 : f32 to vector<2x1xf32>
    %139 = arith.select %32, %137, %138 : vector<2x1xi1>, vector<2x1xf32>
    %140 = vector.extract_strided_slice %29 {offsets = [0, 16], sizes = [2, 256], strides = [1, 1]} : vector<2x358xf32> to vector<2x256xf32>
    %141 = vector.broadcast %139 : vector<2x1xf32> to vector<2x256xf32>
    %142 = arith.mulf %141, %140 : vector<2x256xf32>
    %143 = arith.addf %136, %142 : vector<2x256xf32>
    %144 = vector.broadcast %96 : f32 to vector<2x1xf32>
    %145 = vector.broadcast %47 : f32 to vector<2x1xf32>
    %146 = arith.select %32, %144, %145 : vector<2x1xi1>, vector<2x1xf32>
    %147 = vector.extract_strided_slice %29 {offsets = [0, 32], sizes = [2, 256], strides = [1, 1]} : vector<2x358xf32> to vector<2x256xf32>
    %148 = vector.broadcast %146 : vector<2x1xf32> to vector<2x256xf32>
    %149 = arith.mulf %148, %147 : vector<2x256xf32>
    %150 = arith.addf %143, %149 : vector<2x256xf32>
    %151 = vector.broadcast %103 : f32 to vector<2x1xf32>
    %152 = vector.broadcast %54 : f32 to vector<2x1xf32>
    %153 = arith.select %32, %151, %152 : vector<2x1xi1>, vector<2x1xf32>
    %154 = vector.extract_strided_slice %29 {offsets = [0, 48], sizes = [2, 256], strides = [1, 1]} : vector<2x358xf32> to vector<2x256xf32>
    %155 = vector.broadcast %153 : vector<2x1xf32> to vector<2x256xf32>
    %156 = arith.mulf %155, %154 : vector<2x256xf32>
    %157 = arith.addf %150, %156 : vector<2x256xf32>
    %158 = vector.broadcast %110 : f32 to vector<2x1xf32>
    %159 = vector.broadcast %61 : f32 to vector<2x1xf32>
    %160 = arith.select %32, %158, %159 : vector<2x1xi1>, vector<2x1xf32>
    %161 = vector.extract_strided_slice %29 {offsets = [0, 64], sizes = [2, 256], strides = [1, 1]} : vector<2x358xf32> to vector<2x256xf32>
    %162 = vector.broadcast %160 : vector<2x1xf32> to vector<2x256xf32>
    %163 = arith.mulf %162, %161 : vector<2x256xf32>
    %164 = arith.addf %157, %163 : vector<2x256xf32>
    %165 = vector.broadcast %117 : f32 to vector<2x1xf32>
    %166 = vector.broadcast %68 : f32 to vector<2x1xf32>
    %167 = arith.select %32, %165, %166 : vector<2x1xi1>, vector<2x1xf32>
    %168 = vector.extract_strided_slice %29 {offsets = [0, 80], sizes = [2, 256], strides = [1, 1]} : vector<2x358xf32> to vector<2x256xf32>
    %169 = vector.broadcast %167 : vector<2x1xf32> to vector<2x256xf32>
    %170 = arith.mulf %169, %168 : vector<2x256xf32>
    %171 = arith.addf %164, %170 : vector<2x256xf32>
    %172 = vector.broadcast %124 : f32 to vector<2x1xf32>
    %173 = vector.broadcast %75 : f32 to vector<2x1xf32>
    %174 = arith.select %32, %172, %173 : vector<2x1xi1>, vector<2x1xf32>
    %175 = vector.extract_strided_slice %29 {offsets = [0, 96], sizes = [2, 256], strides = [1, 1]} : vector<2x358xf32> to vector<2x256xf32>
    %176 = vector.broadcast %174 : vector<2x1xf32> to vector<2x256xf32>
    %177 = arith.mulf %176, %175 : vector<2x256xf32>
    %178 = arith.addf %171, %177 : vector<2x256xf32>
    %c0_13 = arith.constant 0 : index
    %c0_14 = arith.constant 0 : index
    %179 = vector.load %arg4[%c0_13, %c0_14] : memref<7x256xf32, #tpu.memory_space<vmem>>, vector<1x256xf32>
    %180 = vector.broadcast %179 : vector<1x256xf32> to vector<2x256xf32>
    %181 = arith.mulf %180, %178 : vector<2x256xf32>
    %182 = vector.broadcast %83 : f32 to vector<2x1xf32>
    %183 = vector.broadcast %34 : f32 to vector<2x1xf32>
    %184 = arith.select %32, %182, %183 : vector<2x1xi1>, vector<2x1xf32>
    %185 = vector.extract_strided_slice %29 {offsets = [0, 1], sizes = [2, 256], strides = [1, 1]} : vector<2x358xf32> to vector<2x256xf32>
    %186 = vector.broadcast %184 : vector<2x1xf32> to vector<2x256xf32>
    %187 = arith.mulf %186, %185 : vector<2x256xf32>
    %188 = vector.broadcast %90 : f32 to vector<2x1xf32>
    %189 = vector.broadcast %41 : f32 to vector<2x1xf32>
    %190 = arith.select %32, %188, %189 : vector<2x1xi1>, vector<2x1xf32>
    %191 = vector.extract_strided_slice %29 {offsets = [0, 17], sizes = [2, 256], strides = [1, 1]} : vector<2x358xf32> to vector<2x256xf32>
    %192 = vector.broadcast %190 : vector<2x1xf32> to vector<2x256xf32>
    %193 = arith.mulf %192, %191 : vector<2x256xf32>
    %194 = arith.addf %187, %193 : vector<2x256xf32>
    %195 = vector.broadcast %97 : f32 to vector<2x1xf32>
    %196 = vector.broadcast %48 : f32 to vector<2x1xf32>
    %197 = arith.select %32, %195, %196 : vector<2x1xi1>, vector<2x1xf32>
    %198 = vector.extract_strided_slice %29 {offsets = [0, 33], sizes = [2, 256], strides = [1, 1]} : vector<2x358xf32> to vector<2x256xf32>
    %199 = vector.broadcast %197 : vector<2x1xf32> to vector<2x256xf32>
    %200 = arith.mulf %199, %198 : vector<2x256xf32>
    %201 = arith.addf %194, %200 : vector<2x256xf32>
    %202 = vector.broadcast %104 : f32 to vector<2x1xf32>
    %203 = vector.broadcast %55 : f32 to vector<2x1xf32>
    %204 = arith.select %32, %202, %203 : vector<2x1xi1>, vector<2x1xf32>
    %205 = vector.extract_strided_slice %29 {offsets = [0, 49], sizes = [2, 256], strides = [1, 1]} : vector<2x358xf32> to vector<2x256xf32>
    %206 = vector.broadcast %204 : vector<2x1xf32> to vector<2x256xf32>
    %207 = arith.mulf %206, %205 : vector<2x256xf32>
    %208 = arith.addf %201, %207 : vector<2x256xf32>
    %209 = vector.broadcast %111 : f32 to vector<2x1xf32>
    %210 = vector.broadcast %62 : f32 to vector<2x1xf32>
    %211 = arith.select %32, %209, %210 : vector<2x1xi1>, vector<2x1xf32>
    %212 = vector.extract_strided_slice %29 {offsets = [0, 65], sizes = [2, 256], strides = [1, 1]} : vector<2x358xf32> to vector<2x256xf32>
    %213 = vector.broadcast %211 : vector<2x1xf32> to vector<2x256xf32>
    %214 = arith.mulf %213, %212 : vector<2x256xf32>
    %215 = arith.addf %208, %214 : vector<2x256xf32>
    %216 = vector.broadcast %118 : f32 to vector<2x1xf32>
    %217 = vector.broadcast %69 : f32 to vector<2x1xf32>
    %218 = arith.select %32, %216, %217 : vector<2x1xi1>, vector<2x1xf32>
    %219 = vector.extract_strided_slice %29 {offsets = [0, 81], sizes = [2, 256], strides = [1, 1]} : vector<2x358xf32> to vector<2x256xf32>
    %220 = vector.broadcast %218 : vector<2x1xf32> to vector<2x256xf32>
    %221 = arith.mulf %220, %219 : vector<2x256xf32>
    %222 = arith.addf %215, %221 : vector<2x256xf32>
    %223 = vector.broadcast %125 : f32 to vector<2x1xf32>
    %224 = vector.broadcast %76 : f32 to vector<2x1xf32>
    %225 = arith.select %32, %223, %224 : vector<2x1xi1>, vector<2x1xf32>
    %226 = vector.extract_strided_slice %29 {offsets = [0, 97], sizes = [2, 256], strides = [1, 1]} : vector<2x358xf32> to vector<2x256xf32>
    %227 = vector.broadcast %225 : vector<2x1xf32> to vector<2x256xf32>
    %228 = arith.mulf %227, %226 : vector<2x256xf32>
    %229 = arith.addf %222, %228 : vector<2x256xf32>
    %c1_15 = arith.constant 1 : index
    %c0_16 = arith.constant 0 : index
    %230 = vector.load %arg4[%c1_15, %c0_16] : memref<7x256xf32, #tpu.memory_space<vmem>>, vector<1x256xf32>
    %231 = vector.broadcast %230 : vector<1x256xf32> to vector<2x256xf32>
    %232 = arith.mulf %231, %229 : vector<2x256xf32>
    %233 = arith.addf %181, %232 : vector<2x256xf32>
    %234 = vector.broadcast %84 : f32 to vector<2x1xf32>
    %235 = vector.broadcast %35 : f32 to vector<2x1xf32>
    %236 = arith.select %32, %234, %235 : vector<2x1xi1>, vector<2x1xf32>
    %237 = vector.extract_strided_slice %29 {offsets = [0, 2], sizes = [2, 256], strides = [1, 1]} : vector<2x358xf32> to vector<2x256xf32>
    %238 = vector.broadcast %236 : vector<2x1xf32> to vector<2x256xf32>
    %239 = arith.mulf %238, %237 : vector<2x256xf32>
    %240 = vector.broadcast %91 : f32 to vector<2x1xf32>
    %241 = vector.broadcast %42 : f32 to vector<2x1xf32>
    %242 = arith.select %32, %240, %241 : vector<2x1xi1>, vector<2x1xf32>
    %243 = vector.extract_strided_slice %29 {offsets = [0, 18], sizes = [2, 256], strides = [1, 1]} : vector<2x358xf32> to vector<2x256xf32>
    %244 = vector.broadcast %242 : vector<2x1xf32> to vector<2x256xf32>
    %245 = arith.mulf %244, %243 : vector<2x256xf32>
    %246 = arith.addf %239, %245 : vector<2x256xf32>
    %247 = vector.broadcast %98 : f32 to vector<2x1xf32>
    %248 = vector.broadcast %49 : f32 to vector<2x1xf32>
    %249 = arith.select %32, %247, %248 : vector<2x1xi1>, vector<2x1xf32>
    %250 = vector.extract_strided_slice %29 {offsets = [0, 34], sizes = [2, 256], strides = [1, 1]} : vector<2x358xf32> to vector<2x256xf32>
    %251 = vector.broadcast %249 : vector<2x1xf32> to vector<2x256xf32>
    %252 = arith.mulf %251, %250 : vector<2x256xf32>
    %253 = arith.addf %246, %252 : vector<2x256xf32>
    %254 = vector.broadcast %105 : f32 to vector<2x1xf32>
    %255 = vector.broadcast %56 : f32 to vector<2x1xf32>
    %256 = arith.select %32, %254, %255 : vector<2x1xi1>, vector<2x1xf32>
    %257 = vector.extract_strided_slice %29 {offsets = [0, 50], sizes = [2, 256], strides = [1, 1]} : vector<2x358xf32> to vector<2x256xf32>
    %258 = vector.broadcast %256 : vector<2x1xf32> to vector<2x256xf32>
    %259 = arith.mulf %258, %257 : vector<2x256xf32>
    %260 = arith.addf %253, %259 : vector<2x256xf32>
    %261 = vector.broadcast %112 : f32 to vector<2x1xf32>
    %262 = vector.broadcast %63 : f32 to vector<2x1xf32>
    %263 = arith.select %32, %261, %262 : vector<2x1xi1>, vector<2x1xf32>
    %264 = vector.extract_strided_slice %29 {offsets = [0, 66], sizes = [2, 256], strides = [1, 1]} : vector<2x358xf32> to vector<2x256xf32>
    %265 = vector.broadcast %263 : vector<2x1xf32> to vector<2x256xf32>
    %266 = arith.mulf %265, %264 : vector<2x256xf32>
    %267 = arith.addf %260, %266 : vector<2x256xf32>
    %268 = vector.broadcast %119 : f32 to vector<2x1xf32>
    %269 = vector.broadcast %70 : f32 to vector<2x1xf32>
    %270 = arith.select %32, %268, %269 : vector<2x1xi1>, vector<2x1xf32>
    %271 = vector.extract_strided_slice %29 {offsets = [0, 82], sizes = [2, 256], strides = [1, 1]} : vector<2x358xf32> to vector<2x256xf32>
    %272 = vector.broadcast %270 : vector<2x1xf32> to vector<2x256xf32>
    %273 = arith.mulf %272, %271 : vector<2x256xf32>
    %274 = arith.addf %267, %273 : vector<2x256xf32>
    %275 = vector.broadcast %126 : f32 to vector<2x1xf32>
    %276 = vector.broadcast %77 : f32 to vector<2x1xf32>
    %277 = arith.select %32, %275, %276 : vector<2x1xi1>, vector<2x1xf32>
    %278 = vector.extract_strided_slice %29 {offsets = [0, 98], sizes = [2, 256], strides = [1, 1]} : vector<2x358xf32> to vector<2x256xf32>
    %279 = vector.broadcast %277 : vector<2x1xf32> to vector<2x256xf32>
    %280 = arith.mulf %279, %278 : vector<2x256xf32>
    %281 = arith.addf %274, %280 : vector<2x256xf32>
    %c2_17 = arith.constant 2 : index
    %c0_18 = arith.constant 0 : index
    %282 = vector.load %arg4[%c2_17, %c0_18] : memref<7x256xf32, #tpu.memory_space<vmem>>, vector<1x256xf32>
    %283 = vector.broadcast %282 : vector<1x256xf32> to vector<2x256xf32>
    %284 = arith.mulf %283, %281 : vector<2x256xf32>
    %285 = arith.addf %233, %284 : vector<2x256xf32>
    %286 = vector.broadcast %85 : f32 to vector<2x1xf32>
    %287 = vector.broadcast %36 : f32 to vector<2x1xf32>
    %288 = arith.select %32, %286, %287 : vector<2x1xi1>, vector<2x1xf32>
    %289 = vector.extract_strided_slice %29 {offsets = [0, 3], sizes = [2, 256], strides = [1, 1]} : vector<2x358xf32> to vector<2x256xf32>
    %290 = vector.broadcast %288 : vector<2x1xf32> to vector<2x256xf32>
    %291 = arith.mulf %290, %289 : vector<2x256xf32>
    %292 = vector.broadcast %92 : f32 to vector<2x1xf32>
    %293 = vector.broadcast %43 : f32 to vector<2x1xf32>
    %294 = arith.select %32, %292, %293 : vector<2x1xi1>, vector<2x1xf32>
    %295 = vector.extract_strided_slice %29 {offsets = [0, 19], sizes = [2, 256], strides = [1, 1]} : vector<2x358xf32> to vector<2x256xf32>
    %296 = vector.broadcast %294 : vector<2x1xf32> to vector<2x256xf32>
    %297 = arith.mulf %296, %295 : vector<2x256xf32>
    %298 = arith.addf %291, %297 : vector<2x256xf32>
    %299 = vector.broadcast %99 : f32 to vector<2x1xf32>
    %300 = vector.broadcast %50 : f32 to vector<2x1xf32>
    %301 = arith.select %32, %299, %300 : vector<2x1xi1>, vector<2x1xf32>
    %302 = vector.extract_strided_slice %29 {offsets = [0, 35], sizes = [2, 256], strides = [1, 1]} : vector<2x358xf32> to vector<2x256xf32>
    %303 = vector.broadcast %301 : vector<2x1xf32> to vector<2x256xf32>
    %304 = arith.mulf %303, %302 : vector<2x256xf32>
    %305 = arith.addf %298, %304 : vector<2x256xf32>
    %306 = vector.broadcast %106 : f32 to vector<2x1xf32>
    %307 = vector.broadcast %57 : f32 to vector<2x1xf32>
    %308 = arith.select %32, %306, %307 : vector<2x1xi1>, vector<2x1xf32>
    %309 = vector.extract_strided_slice %29 {offsets = [0, 51], sizes = [2, 256], strides = [1, 1]} : vector<2x358xf32> to vector<2x256xf32>
    %310 = vector.broadcast %308 : vector<2x1xf32> to vector<2x256xf32>
    %311 = arith.mulf %310, %309 : vector<2x256xf32>
    %312 = arith.addf %305, %311 : vector<2x256xf32>
    %313 = vector.broadcast %113 : f32 to vector<2x1xf32>
    %314 = vector.broadcast %64 : f32 to vector<2x1xf32>
    %315 = arith.select %32, %313, %314 : vector<2x1xi1>, vector<2x1xf32>
    %316 = vector.extract_strided_slice %29 {offsets = [0, 67], sizes = [2, 256], strides = [1, 1]} : vector<2x358xf32> to vector<2x256xf32>
    %317 = vector.broadcast %315 : vector<2x1xf32> to vector<2x256xf32>
    %318 = arith.mulf %317, %316 : vector<2x256xf32>
    %319 = arith.addf %312, %318 : vector<2x256xf32>
    %320 = vector.broadcast %120 : f32 to vector<2x1xf32>
    %321 = vector.broadcast %71 : f32 to vector<2x1xf32>
    %322 = arith.select %32, %320, %321 : vector<2x1xi1>, vector<2x1xf32>
    %323 = vector.extract_strided_slice %29 {offsets = [0, 83], sizes = [2, 256], strides = [1, 1]} : vector<2x358xf32> to vector<2x256xf32>
    %324 = vector.broadcast %322 : vector<2x1xf32> to vector<2x256xf32>
    %325 = arith.mulf %324, %323 : vector<2x256xf32>
    %326 = arith.addf %319, %325 : vector<2x256xf32>
    %327 = vector.broadcast %127 : f32 to vector<2x1xf32>
    %328 = vector.broadcast %78 : f32 to vector<2x1xf32>
    %329 = arith.select %32, %327, %328 : vector<2x1xi1>, vector<2x1xf32>
    %330 = vector.extract_strided_slice %29 {offsets = [0, 99], sizes = [2, 256], strides = [1, 1]} : vector<2x358xf32> to vector<2x256xf32>
    %331 = vector.broadcast %329 : vector<2x1xf32> to vector<2x256xf32>
    %332 = arith.mulf %331, %330 : vector<2x256xf32>
    %333 = arith.addf %326, %332 : vector<2x256xf32>
    %c3_19 = arith.constant 3 : index
    %c0_20 = arith.constant 0 : index
    %334 = vector.load %arg4[%c3_19, %c0_20] : memref<7x256xf32, #tpu.memory_space<vmem>>, vector<1x256xf32>
    %335 = vector.broadcast %334 : vector<1x256xf32> to vector<2x256xf32>
    %336 = arith.mulf %335, %333 : vector<2x256xf32>
    %337 = arith.addf %285, %336 : vector<2x256xf32>
    %338 = vector.broadcast %86 : f32 to vector<2x1xf32>
    %339 = vector.broadcast %37 : f32 to vector<2x1xf32>
    %340 = arith.select %32, %338, %339 : vector<2x1xi1>, vector<2x1xf32>
    %341 = vector.extract_strided_slice %29 {offsets = [0, 4], sizes = [2, 256], strides = [1, 1]} : vector<2x358xf32> to vector<2x256xf32>
    %342 = vector.broadcast %340 : vector<2x1xf32> to vector<2x256xf32>
    %343 = arith.mulf %342, %341 : vector<2x256xf32>
    %344 = vector.broadcast %93 : f32 to vector<2x1xf32>
    %345 = vector.broadcast %44 : f32 to vector<2x1xf32>
    %346 = arith.select %32, %344, %345 : vector<2x1xi1>, vector<2x1xf32>
    %347 = vector.extract_strided_slice %29 {offsets = [0, 20], sizes = [2, 256], strides = [1, 1]} : vector<2x358xf32> to vector<2x256xf32>
    %348 = vector.broadcast %346 : vector<2x1xf32> to vector<2x256xf32>
    %349 = arith.mulf %348, %347 : vector<2x256xf32>
    %350 = arith.addf %343, %349 : vector<2x256xf32>
    %351 = vector.broadcast %100 : f32 to vector<2x1xf32>
    %352 = vector.broadcast %51 : f32 to vector<2x1xf32>
    %353 = arith.select %32, %351, %352 : vector<2x1xi1>, vector<2x1xf32>
    %354 = vector.extract_strided_slice %29 {offsets = [0, 36], sizes = [2, 256], strides = [1, 1]} : vector<2x358xf32> to vector<2x256xf32>
    %355 = vector.broadcast %353 : vector<2x1xf32> to vector<2x256xf32>
    %356 = arith.mulf %355, %354 : vector<2x256xf32>
    %357 = arith.addf %350, %356 : vector<2x256xf32>
    %358 = vector.broadcast %107 : f32 to vector<2x1xf32>
    %359 = vector.broadcast %58 : f32 to vector<2x1xf32>
    %360 = arith.select %32, %358, %359 : vector<2x1xi1>, vector<2x1xf32>
    %361 = vector.extract_strided_slice %29 {offsets = [0, 52], sizes = [2, 256], strides = [1, 1]} : vector<2x358xf32> to vector<2x256xf32>
    %362 = vector.broadcast %360 : vector<2x1xf32> to vector<2x256xf32>
    %363 = arith.mulf %362, %361 : vector<2x256xf32>
    %364 = arith.addf %357, %363 : vector<2x256xf32>
    %365 = vector.broadcast %114 : f32 to vector<2x1xf32>
    %366 = vector.broadcast %65 : f32 to vector<2x1xf32>
    %367 = arith.select %32, %365, %366 : vector<2x1xi1>, vector<2x1xf32>
    %368 = vector.extract_strided_slice %29 {offsets = [0, 68], sizes = [2, 256], strides = [1, 1]} : vector<2x358xf32> to vector<2x256xf32>
    %369 = vector.broadcast %367 : vector<2x1xf32> to vector<2x256xf32>
    %370 = arith.mulf %369, %368 : vector<2x256xf32>
    %371 = arith.addf %364, %370 : vector<2x256xf32>
    %372 = vector.broadcast %121 : f32 to vector<2x1xf32>
    %373 = vector.broadcast %72 : f32 to vector<2x1xf32>
    %374 = arith.select %32, %372, %373 : vector<2x1xi1>, vector<2x1xf32>
    %375 = vector.extract_strided_slice %29 {offsets = [0, 84], sizes = [2, 256], strides = [1, 1]} : vector<2x358xf32> to vector<2x256xf32>
    %376 = vector.broadcast %374 : vector<2x1xf32> to vector<2x256xf32>
    %377 = arith.mulf %376, %375 : vector<2x256xf32>
    %378 = arith.addf %371, %377 : vector<2x256xf32>
    %379 = vector.broadcast %128 : f32 to vector<2x1xf32>
    %380 = vector.broadcast %79 : f32 to vector<2x1xf32>
    %381 = arith.select %32, %379, %380 : vector<2x1xi1>, vector<2x1xf32>
    %382 = vector.extract_strided_slice %29 {offsets = [0, 100], sizes = [2, 256], strides = [1, 1]} : vector<2x358xf32> to vector<2x256xf32>
    %383 = vector.broadcast %381 : vector<2x1xf32> to vector<2x256xf32>
    %384 = arith.mulf %383, %382 : vector<2x256xf32>
    %385 = arith.addf %378, %384 : vector<2x256xf32>
    %c4_21 = arith.constant 4 : index
    %c0_22 = arith.constant 0 : index
    %386 = vector.load %arg4[%c4_21, %c0_22] : memref<7x256xf32, #tpu.memory_space<vmem>>, vector<1x256xf32>
    %387 = vector.broadcast %386 : vector<1x256xf32> to vector<2x256xf32>
    %388 = arith.mulf %387, %385 : vector<2x256xf32>
    %389 = arith.addf %337, %388 : vector<2x256xf32>
    %390 = vector.broadcast %87 : f32 to vector<2x1xf32>
    %391 = vector.broadcast %38 : f32 to vector<2x1xf32>
    %392 = arith.select %32, %390, %391 : vector<2x1xi1>, vector<2x1xf32>
    %393 = vector.extract_strided_slice %29 {offsets = [0, 5], sizes = [2, 256], strides = [1, 1]} : vector<2x358xf32> to vector<2x256xf32>
    %394 = vector.broadcast %392 : vector<2x1xf32> to vector<2x256xf32>
    %395 = arith.mulf %394, %393 : vector<2x256xf32>
    %396 = vector.broadcast %94 : f32 to vector<2x1xf32>
    %397 = vector.broadcast %45 : f32 to vector<2x1xf32>
    %398 = arith.select %32, %396, %397 : vector<2x1xi1>, vector<2x1xf32>
    %399 = vector.extract_strided_slice %29 {offsets = [0, 21], sizes = [2, 256], strides = [1, 1]} : vector<2x358xf32> to vector<2x256xf32>
    %400 = vector.broadcast %398 : vector<2x1xf32> to vector<2x256xf32>
    %401 = arith.mulf %400, %399 : vector<2x256xf32>
    %402 = arith.addf %395, %401 : vector<2x256xf32>
    %403 = vector.broadcast %101 : f32 to vector<2x1xf32>
    %404 = vector.broadcast %52 : f32 to vector<2x1xf32>
    %405 = arith.select %32, %403, %404 : vector<2x1xi1>, vector<2x1xf32>
    %406 = vector.extract_strided_slice %29 {offsets = [0, 37], sizes = [2, 256], strides = [1, 1]} : vector<2x358xf32> to vector<2x256xf32>
    %407 = vector.broadcast %405 : vector<2x1xf32> to vector<2x256xf32>
    %408 = arith.mulf %407, %406 : vector<2x256xf32>
    %409 = arith.addf %402, %408 : vector<2x256xf32>
    %410 = vector.broadcast %108 : f32 to vector<2x1xf32>
    %411 = vector.broadcast %59 : f32 to vector<2x1xf32>
    %412 = arith.select %32, %410, %411 : vector<2x1xi1>, vector<2x1xf32>
    %413 = vector.extract_strided_slice %29 {offsets = [0, 53], sizes = [2, 256], strides = [1, 1]} : vector<2x358xf32> to vector<2x256xf32>
    %414 = vector.broadcast %412 : vector<2x1xf32> to vector<2x256xf32>
    %415 = arith.mulf %414, %413 : vector<2x256xf32>
    %416 = arith.addf %409, %415 : vector<2x256xf32>
    %417 = vector.broadcast %115 : f32 to vector<2x1xf32>
    %418 = vector.broadcast %66 : f32 to vector<2x1xf32>
    %419 = arith.select %32, %417, %418 : vector<2x1xi1>, vector<2x1xf32>
    %420 = vector.extract_strided_slice %29 {offsets = [0, 69], sizes = [2, 256], strides = [1, 1]} : vector<2x358xf32> to vector<2x256xf32>
    %421 = vector.broadcast %419 : vector<2x1xf32> to vector<2x256xf32>
    %422 = arith.mulf %421, %420 : vector<2x256xf32>
    %423 = arith.addf %416, %422 : vector<2x256xf32>
    %424 = vector.broadcast %122 : f32 to vector<2x1xf32>
    %425 = vector.broadcast %73 : f32 to vector<2x1xf32>
    %426 = arith.select %32, %424, %425 : vector<2x1xi1>, vector<2x1xf32>
    %427 = vector.extract_strided_slice %29 {offsets = [0, 85], sizes = [2, 256], strides = [1, 1]} : vector<2x358xf32> to vector<2x256xf32>
    %428 = vector.broadcast %426 : vector<2x1xf32> to vector<2x256xf32>
    %429 = arith.mulf %428, %427 : vector<2x256xf32>
    %430 = arith.addf %423, %429 : vector<2x256xf32>
    %431 = vector.broadcast %129 : f32 to vector<2x1xf32>
    %432 = vector.broadcast %80 : f32 to vector<2x1xf32>
    %433 = arith.select %32, %431, %432 : vector<2x1xi1>, vector<2x1xf32>
    %434 = vector.extract_strided_slice %29 {offsets = [0, 101], sizes = [2, 256], strides = [1, 1]} : vector<2x358xf32> to vector<2x256xf32>
    %435 = vector.broadcast %433 : vector<2x1xf32> to vector<2x256xf32>
    %436 = arith.mulf %435, %434 : vector<2x256xf32>
    %437 = arith.addf %430, %436 : vector<2x256xf32>
    %c5_23 = arith.constant 5 : index
    %c0_24 = arith.constant 0 : index
    %438 = vector.load %arg4[%c5_23, %c0_24] : memref<7x256xf32, #tpu.memory_space<vmem>>, vector<1x256xf32>
    %439 = vector.broadcast %438 : vector<1x256xf32> to vector<2x256xf32>
    %440 = arith.mulf %439, %437 : vector<2x256xf32>
    %441 = arith.addf %389, %440 : vector<2x256xf32>
    %442 = vector.broadcast %88 : f32 to vector<2x1xf32>
    %443 = vector.broadcast %39 : f32 to vector<2x1xf32>
    %444 = arith.select %32, %442, %443 : vector<2x1xi1>, vector<2x1xf32>
    %445 = vector.extract_strided_slice %29 {offsets = [0, 6], sizes = [2, 256], strides = [1, 1]} : vector<2x358xf32> to vector<2x256xf32>
    %446 = vector.broadcast %444 : vector<2x1xf32> to vector<2x256xf32>
    %447 = arith.mulf %446, %445 : vector<2x256xf32>
    %448 = vector.broadcast %95 : f32 to vector<2x1xf32>
    %449 = vector.broadcast %46 : f32 to vector<2x1xf32>
    %450 = arith.select %32, %448, %449 : vector<2x1xi1>, vector<2x1xf32>
    %451 = vector.extract_strided_slice %29 {offsets = [0, 22], sizes = [2, 256], strides = [1, 1]} : vector<2x358xf32> to vector<2x256xf32>
    %452 = vector.broadcast %450 : vector<2x1xf32> to vector<2x256xf32>
    %453 = arith.mulf %452, %451 : vector<2x256xf32>
    %454 = arith.addf %447, %453 : vector<2x256xf32>
    %455 = vector.broadcast %102 : f32 to vector<2x1xf32>
    %456 = vector.broadcast %53 : f32 to vector<2x1xf32>
    %457 = arith.select %32, %455, %456 : vector<2x1xi1>, vector<2x1xf32>
    %458 = vector.extract_strided_slice %29 {offsets = [0, 38], sizes = [2, 256], strides = [1, 1]} : vector<2x358xf32> to vector<2x256xf32>
    %459 = vector.broadcast %457 : vector<2x1xf32> to vector<2x256xf32>
    %460 = arith.mulf %459, %458 : vector<2x256xf32>
    %461 = arith.addf %454, %460 : vector<2x256xf32>
    %462 = vector.broadcast %109 : f32 to vector<2x1xf32>
    %463 = vector.broadcast %60 : f32 to vector<2x1xf32>
    %464 = arith.select %32, %462, %463 : vector<2x1xi1>, vector<2x1xf32>
    %465 = vector.extract_strided_slice %29 {offsets = [0, 54], sizes = [2, 256], strides = [1, 1]} : vector<2x358xf32> to vector<2x256xf32>
    %466 = vector.broadcast %464 : vector<2x1xf32> to vector<2x256xf32>
    %467 = arith.mulf %466, %465 : vector<2x256xf32>
    %468 = arith.addf %461, %467 : vector<2x256xf32>
    %469 = vector.broadcast %116 : f32 to vector<2x1xf32>
    %470 = vector.broadcast %67 : f32 to vector<2x1xf32>
    %471 = arith.select %32, %469, %470 : vector<2x1xi1>, vector<2x1xf32>
    %472 = vector.extract_strided_slice %29 {offsets = [0, 70], sizes = [2, 256], strides = [1, 1]} : vector<2x358xf32> to vector<2x256xf32>
    %473 = vector.broadcast %471 : vector<2x1xf32> to vector<2x256xf32>
    %474 = arith.mulf %473, %472 : vector<2x256xf32>
    %475 = arith.addf %468, %474 : vector<2x256xf32>
    %476 = vector.broadcast %123 : f32 to vector<2x1xf32>
    %477 = vector.broadcast %74 : f32 to vector<2x1xf32>
    %478 = arith.select %32, %476, %477 : vector<2x1xi1>, vector<2x1xf32>
    %479 = vector.extract_strided_slice %29 {offsets = [0, 86], sizes = [2, 256], strides = [1, 1]} : vector<2x358xf32> to vector<2x256xf32>
    %480 = vector.broadcast %478 : vector<2x1xf32> to vector<2x256xf32>
    %481 = arith.mulf %480, %479 : vector<2x256xf32>
    %482 = arith.addf %475, %481 : vector<2x256xf32>
    %483 = vector.broadcast %130 : f32 to vector<2x1xf32>
    %484 = vector.broadcast %81 : f32 to vector<2x1xf32>
    %485 = arith.select %32, %483, %484 : vector<2x1xi1>, vector<2x1xf32>
    %486 = vector.extract_strided_slice %29 {offsets = [0, 102], sizes = [2, 256], strides = [1, 1]} : vector<2x358xf32> to vector<2x256xf32>
    %487 = vector.broadcast %485 : vector<2x1xf32> to vector<2x256xf32>
    %488 = arith.mulf %487, %486 : vector<2x256xf32>
    %489 = arith.addf %482, %488 : vector<2x256xf32>
    %c6_25 = arith.constant 6 : index
    %c0_26 = arith.constant 0 : index
    %490 = vector.load %arg4[%c6_25, %c0_26] : memref<7x256xf32, #tpu.memory_space<vmem>>, vector<1x256xf32>
    %491 = vector.broadcast %490 : vector<1x256xf32> to vector<2x256xf32>
    %492 = arith.mulf %491, %489 : vector<2x256xf32>
    %493 = arith.addf %441, %492 : vector<2x256xf32>
    %494 = vector.extract_strided_slice %493 {offsets = [0, 0], sizes = [1, 256], strides = [1, 1]} : vector<2x256xf32> to vector<1x256xf32>
    %495 = vector.extract_strided_slice %493 {offsets = [1, 0], sizes = [1, 256], strides = [1, 1]} : vector<2x256xf32> to vector<1x256xf32>
    %496 = arith.addf %494, %495 : vector<1x256xf32>
    %497 = arith.negf %496 : vector<1x256xf32>
    %498 = math.exp %497 : vector<1x256xf32>
    %cst_27 = arith.constant 1.000000e+00 : f32
    %499 = vector.broadcast %cst_27 : f32 to vector<1x256xf32>
    %500 = arith.addf %499, %498 : vector<1x256xf32>
    %501 = arith.divf %499, %500 : vector<1x256xf32>
    %502 = vector.shape_cast %501 : vector<1x256xf32> to vector<1x1x256xf32>
    %503 = vector.broadcast %502 : vector<1x1x256xf32> to vector<1x4x256xf32>
    %504 = arith.mulf %19, %503 : vector<1x4x256xf32>
    %c0_28 = arith.constant 0 : index
    %c0_29 = arith.constant 0 : index
    %c0_30 = arith.constant 0 : index
    %505 = vector.load %arg6[%c0_28, %c0_29, %c0_30] : memref<1x4x256xf32, #tpu.memory_space<vmem>>, vector<1x4x256xf32>
    tpu.vector_store %arg6[%c0_28, %c0_29, %c0_30], %504 {strides = array<i32>} : memref<1x4x256xf32, #tpu.memory_space<vmem>>, vector<1x4x256xf32>,
    return
  }
  func.func @transform_0(%arg0: i32) -> (i32, i32, i32) {
    %c0_i32 = arith.constant 0 : i32
    %c0_i32_0 = arith.constant 0 : i32
    %c0_i32_1 = arith.constant 0 : i32
    return %arg0, %c0_i32, %c0_i32_0 : i32, i32, i32
  }
  func.func @transform_1(%arg0: i32) -> (i32, i32) {
    %c0_i32 = arith.constant 0 : i32
    %c0_i32_0 = arith.constant 0 : i32
    %c0_i32_1 = arith.constant 0 : i32
    return %c0_i32, %c0_i32_0 : i32, i32
  }
  func.func @transform_2(%arg0: i32) -> (i32, i32) {
    %c0_i32 = arith.constant 0 : i32
    %c0_i32_0 = arith.constant 0 : i32
    %c0_i32_1 = arith.constant 0 : i32
    return %c0_i32, %c0_i32_0 : i32, i32
  }
  func.func @transform_3(%arg0: i32) -> (i32, i32) {
    %c0_i32 = arith.constant 0 : i32
    %c0_i32_0 = arith.constant 0 : i32
    %c0_i32_1 = arith.constant 0 : i32
    return %c0_i32, %c0_i32_0 : i32, i32
  }
  func.func @transform_4(%arg0: i32) -> i32 {
    %c0_i32 = arith.constant 0 : i32
    %c0_i32_0 = arith.constant 0 : i32
    return %c0_i32 : i32
  }
  func.func @transform_5(%arg0: i32) -> (i32, i32, i32) {
    %c0_i32 = arith.constant 0 : i32
    %c0_i32_0 = arith.constant 0 : i32
    %c0_i32_1 = arith.constant 0 : i32
    return %arg0, %c0_i32, %c0_i32_0 : i32, i32, i32
  }
}

</mosaic_0001>

<llo_original>
// kernel: tpu_custom_call.1
$region0: #{tpu_custom_call.1}
  #allocation0 [shape = 'u32[]', space=smem, size = 0x4, offset = 0x4, fixed_abs, tag = 'smem constant byte address 0x4 - core index']
  #allocation1 [shape = 'u32[144,128]{1,0:T(1,128)}', space=vmem, size = 0x12000, scoped, tag = 'internal scratch']
  %s0 = inlined_call_operand.hbm [shape: f32[2,4,256], index: 0, kind: input, shape index: {}]
  %s1 = inlined_call_operand.hbm [shape: f32[4,4], index: 1, kind: input, shape index: {}]
  %s2 = inlined_call_operand.vmem [shape: f32[1,4], index: 2, kind: input, shape index: {}]
  %s3 = inlined_call_operand.hbm [shape: f32[7,256], index: 3, kind: input, shape index: {}]
  %s4 = inlined_call_operand.vmem [shape: f32[98], index: 4, kind: input, shape index: {}]
  %s5 = inlined_call_operand.hbm [shape: f32[2,4,256], index: 5, kind: output, shape index: {}]
  %s6 = sld [smem:[#allocation0]]
  $region69: #{tpu_custom_call.1} parent=0
    _
  %s8 = ssub.s32 1, %s6
  %s9 = scalar_select 0, %s8, %s6
  $region1: #{tpu_custom_call.1} parent=0
    #allocation2 [shape = 'u8[8192]{0}', space=vmem, size = 0x2000, scoped, tag = 'input window, operand 0']
    #allocation3 [shape = 's32[2]{0}', space=sflag, size = 0x8, scoped, tag = 'scoped memory for tpu_custom_call.1']
    #allocation4 [shape = 's32[2]{0}', space=sflag, size = 0x8, scoped, tag = 'scoped memory for tpu_custom_call.1']
    #allocation5 [shape = 's32[2]{0}', space=sflag, size = 0x8, scoped, tag = 'scoped memory for tpu_custom_call.1']
    #allocation6 [shape = 'u8[2048]{0}', space=vmem, size = 0x800, scoped, tag = 'input window, operand 1, single buffered']
    #allocation7 [shape = 's32[1]{0}', space=sflag, size = 0x4, scoped, tag = 'scoped memory for tpu_custom_call.1']
    #allocation8 [shape = 'u8[8192]{0}', space=vmem, size = 0x2000, scoped, tag = 'input window, operand 3, single buffered']
    #allocation9 [shape = 'u8[512]{0}', space=smem, size = 0x200, scoped, tag = 'input window, operand 4, single buffered']
    #allocation10 [shape = 'u8[8192]{0}', space=vmem, size = 0x2000, scoped, tag = 'output window, operand 0']
    %10 = vsyncpa [#allocation3], 0
    %s11 = scalar_lea.sflag [#allocation3], 1
    %12 = vsyncpa %s11, 0
    %13 = vsyncpa [#allocation7], 0
    %14 = vsyncpa [#allocation5], 0
    %15 = vsyncpa [#allocation4], 0
    %s16 = scalar_lea.sflag [#allocation4], 1
    %17 = vsyncpa %s16, 0
    loop: start=0, step=1, limit=4
    $region2: #{tpu_custom_call.1} parent=1 // loop_pre_header
      _
    $region3: #{tpu_custom_call.1} parent=1 // loop_header
      %s19 = sphi 0, %s23
      %p20 = scmp.ge.s32.totalorder %s19, 4
      %s29 = sphi 0, %s31
      %s32 = sphi 0, %s29
      %s33 = sphi 0, %s32
      %s49 = sphi 0, %s33
      %s53 = sphi 0, %s53
      %s55 = sphi 0, %s53
      %s56 = sphi 0, %s55
      %s70 = sphi 0, %s56
      %s74 = sphi 0, %s74
      %s76 = sphi 0, %s74
      %s77 = sphi 0, %s76
      %s91 = sphi 0, %s77
      %s95 = sphi 0, %s95
      %s97 = sphi 0, %s95
      %s98 = sphi 0, %s97
      %s112 = sphi 0, %s98
      %s116 = sphi 0, %s116
      %s118 = sphi 0, %s116
      %s119 = sphi 0, %s118
      %s133 = sphi 0, %s119
      %s139 = sphi 0, %s141
      %s142 = sphi 0, %s139
      %s143 = sphi 0, %s142
      %s159 = sphi 0, %s143
    $region4: #{tpu_custom_call.1} parent=1 // loop_header_branch
      %22 = sbr.rel (%p20) target = $region8
    $region5: #{tpu_custom_call.1} parent=1 // loop_body
      %s24 = ssub.s32 %s19, 1
      %s25 = ssub.s32 %s19, 2
      %s26 = sadd.s32 %s19, 1
      %s27 = ssub.s32 %s19, %s26
      %p28 = scmp.eq.s32.totalorder %s27, 0
      %s30 = sadd.s32 %s29, 1
      %s31 = scalar_select %p28, %s29, %s30
      %p34 = pneg %p28
      %p35 = scmp.eq.s32.totalorder %s19, 1
      %p36 = por %p34, %p35
      %p37 = scmp.ne.s32.totalorder %s29, %s32
      %p38 = scmp.eq.s32.totalorder %s19, 0
      %p39 = por %p37, %p38
      %p40 = scmp.ne.s32.totalorder %s29, %s32
      %p41 = scmp.eq.s32.totalorder %s24, 1
      %p42 = por %p40, %p41
      %p43 = scmp.ne.s32.totalorder %s32, %s33
      %p44 = scmp.eq.s32.totalorder %s24, 0
      %p45 = por %p43, %p44
      %p46 = scmp.ne.s32.totalorder %s32, %s33
      %p47 = scmp.eq.s32.totalorder %s25, 1
      %p48 = por %p46, %p47
      %p50 = scmp.ne.s32.totalorder %s33, %s49
      %p51 = scmp.eq.s32.totalorder %s25, 0
      %p52 = por %p50, %p51
      %s54 = sadd.s32 %s53, 1
      %p57 = scmp.eq.s32.totalorder %s19, 1
      %p58 = scmp.ne.s32.totalorder %s53, %s55
      %p59 = scmp.eq.s32.totalorder %s19, 0
      %p60 = por %p58, %p59
      %p61 = scmp.ne.s32.totalorder %s53, %s55
      %p62 = scmp.eq.s32.totalorder %s24, 1
      %p63 = por %p61, %p62
      %p64 = scmp.ne.s32.totalorder %s55, %s56
      %p65 = scmp.eq.s32.totalorder %s24, 0
      %p66 = por %p64, %p65
      %p67 = scmp.ne.s32.totalorder %s55, %s56
      %p68 = scmp.eq.s32.totalorder %s25, 1
      %p69 = por %p67, %p68
      %p71 = scmp.ne.s32.totalorder %s56, %s70
      %p72 = scmp.eq.s32.totalorder %s25, 0
      %p73 = por %p71, %p72
      %s75 = sadd.s32 %s74, 1
      %p78 = scmp.eq.s32.totalorder %s19, 1
      %p79 = scmp.ne.s32.totalorder %s74, %s76
      %p80 = scmp.eq.s32.totalorder %s19, 0
      %p81 = por %p79, %p80
      %p82 = scmp.ne.s32.totalorder %s74, %s76
      %p83 = scmp.eq.s32.totalorder %s24, 1
      %p84 = por %p82, %p83
      %p85 = scmp.ne.s32.totalorder %s76, %s77
      %p86 = scmp.eq.s32.totalorder %s24, 0
      %p87 = por %p85, %p86
      %p88 = scmp.ne.s32.totalorder %s76, %s77
      %p89 = scmp.eq.s32.totalorder %s25, 1
      %p90 = por %p88, %p89
      %p92 = scmp.ne.s32.totalorder %s77, %s91
      %p93 = scmp.eq.s32.totalorder %s25, 0
      %p94 = por %p92, %p93
      %s96 = sadd.s32 %s95, 1
      %p99 = scmp.eq.s32.totalorder %s19, 1
      %p100 = scmp.ne.s32.totalorder %s95, %s97
      %p101 = scmp.eq.s32.totalorder %s19, 0
      %p102 = por %p100, %p101
      %p103 = scmp.ne.s32.totalorder %s95, %s97
      %p104 = scmp.eq.s32.totalorder %s24, 1
      %p105 = por %p103, %p104
      %p106 = scmp.ne.s32.totalorder %s97, %s98
      %p107 = scmp.eq.s32.totalorder %s24, 0
      %p108 = por %p106, %p107
      %p109 = scmp.ne.s32.totalorder %s97, %s98
      %p110 = scmp.eq.s32.totalorder %s25, 1
      %p111 = por %p109, %p110
      %p113 = scmp.ne.s32.totalorder %s98, %s112
      %p114 = scmp.eq.s32.totalorder %s25, 0
      %p115 = por %p113, %p114
      %s117 = sadd.s32 %s116, 1
      %p120 = scmp.eq.s32.totalorder %s19, 1
      %p121 = scmp.ne.s32.totalorder %s116, %s118
      %p122 = scmp.eq.s32.totalorder %s19, 0
      %p123 = por %p121, %p122
      %p124 = scmp.ne.s32.totalorder %s116, %s118
      %p125 = scmp.eq.s32.totalorder %s24, 1
      %p126 = por %p124, %p125
      %p127 = scmp.ne.s32.totalorder %s118, %s119
      %p128 = scmp.eq.s32.totalorder %s24, 0
      %p129 = por %p127, %p128
      %p130 = scmp.ne.s32.totalorder %s118, %s119
      %p131 = scmp.eq.s32.totalorder %s25, 1
      %p132 = por %p130, %p131
      %p134 = scmp.ne.s32.totalorder %s119, %s133
      %p135 = scmp.eq.s32.totalorder %s25, 0
      %p136 = por %p134, %p135
      %s137 = ssub.s32 %s19, %s26
      %p138 = scmp.eq.s32.totalorder %s137, 0
      %s140 = sadd.s32 %s139, 1
      %s141 = scalar_select %p138, %s139, %s140
      %p144 = pneg %p138
      %p145 = scmp.eq.s32.totalorder %s19, 1
      %p146 = por %p144, %p145
      %p147 = scmp.ne.s32.totalorder %s139, %s142
      %p148 = scmp.eq.s32.totalorder %s19, 0
      %p149 = por %p147, %p148
      %p150 = scmp.ne.s32.totalorder %s139, %s142
      %p151 = scmp.eq.s32.totalorder %s24, 1
      %p152 = por %p150, %p151
      %p153 = scmp.ne.s32.totalorder %s142, %s143
      %p154 = scmp.eq.s32.totalorder %s24, 0
      %p155 = por %p153, %p154
      %p156 = scmp.ne.s32.totalorder %s142, %s143
      %p157 = scmp.eq.s32.totalorder %s25, 1
      %p158 = por %p156, %p157
      %p160 = scmp.ne.s32.totalorder %s143, %s159
      %p161 = scmp.eq.s32.totalorder %s25, 0
      %p162 = por %p160, %p161
      %p163 = scmp.le.s32.totalorder 1, %s19
      %p164 = scmp.lt.s32.totalorder %s19, 3
      %p165 = pnand %p163, %p164
      %p166 = pneg %p165
      // Predicated region
      $region9: #{tpu_custom_call.1} parent=5 // pred_check
        _
      $region10: #{tpu_custom_call.1} parent=5 // pred_check_branch
        %168 = sbr.rel (%p165) target = $region12
      $region11: #{tpu_custom_call.1} parent=5 // pred_region
        %s169 = ssub.s32 %s19, 1
        // Predicated region
        $region13: #{tpu_custom_call.1} parent=11 // pred_check
          %p170 = pneg %p66
        $region14: #{tpu_custom_call.1} parent=11 // pred_check_branch
          %172 = sbr.rel (%p170) target = $region16
        $region15: #{tpu_custom_call.1} parent=11 // pred_region
          %s174 = ssub.s32 64, 64
          %175 = vsyncadd [#allocation7], %s174
          %s177 = sshll.u32 [#allocation6], 4
          %s178 = int_to_ptr.vmem [resolvable:$true] %s177
          %180 = dma.hbm_to_vmem [thread:$0]  %s1, 64, %s178, [#allocation7]
        $region16: #{tpu_custom_call.1} parent=11 // pred_fallthru
          _
        // Predicated region
        $region17: #{tpu_custom_call.1} parent=11 // pred_check
          %p181 = pneg %p87
        $region18: #{tpu_custom_call.1} parent=11 // pred_check_branch
          %183 = sbr.rel (%p181) target = $region20
        $region19: #{tpu_custom_call.1} parent=11 // pred_region
          _
        $region20: #{tpu_custom_call.1} parent=11 // pred_fallthru
          _
        // Predicated region
        $region21: #{tpu_custom_call.1} parent=11 // pred_check
          %p184 = pneg %p108
        $region22: #{tpu_custom_call.1} parent=11 // pred_check_branch
          %186 = sbr.rel (%p184) target = $region24
        $region23: #{tpu_custom_call.1} parent=11 // pred_region
          %s188 = ssub.s32 256, 256
          %189 = vsyncadd [#allocation7], %s188
          %s191 = sshll.u32 [#allocation8], 4
          %s192 = int_to_ptr.vmem [resolvable:$true] %s191
          %194 = dma.hbm_to_vmem [thread:$0]  %s3, 256, %s192, [#allocation7]
        $region24: #{tpu_custom_call.1} parent=11 // pred_fallthru
          _
        // Predicated region
        $region25: #{tpu_custom_call.1} parent=11 // pred_check
          %p195 = pneg %p129
        $region26: #{tpu_custom_call.1} parent=11 // pred_check_branch
          %197 = sbr.rel (%p195) target = $region28
        $region27: #{tpu_custom_call.1} parent=11 // pred_region
          %s199 = ssub.s32 16, 16
          %200 = vsyncadd [#allocation5], %s199
          %s202 = sshll.u32 %s4, 4
          %s203 = int_to_ptr.vmem [resolvable:$true] %s202
          %205 = dma.vmem_to_smem %s203, 16, [#allocation9], [#allocation5]
        $region28: #{tpu_custom_call.1} parent=11 // pred_fallthru
          _
      $region12: #{tpu_custom_call.1} parent=5 // pred_fallthru
        _
      %p206 = scmp.lt.s32.totalorder %s19, 2
      // Predicated region
      $region29: #{tpu_custom_call.1} parent=5 // pred_check
        %p207 = pneg %p206
      $region30: #{tpu_custom_call.1} parent=5 // pred_check_branch
        %209 = sbr.rel (%p207) target = $region32
      $region31: #{tpu_custom_call.1} parent=5 // pred_region
        // Predicated region
        $region33: #{tpu_custom_call.1} parent=31 // pred_check
          %p210 = pneg %p39
        $region34: #{tpu_custom_call.1} parent=31 // pred_check_branch
          %212 = sbr.rel (%p210) target = $region36
        $region35: #{tpu_custom_call.1} parent=31 // pred_region
          %s213 = sand.u32 %s29, 1
          %s214 = scalar_lea.sflag [#allocation3], %s213
          %s215 = sand.u32 %s29, 1
          %s216 = smul.addr %s215, 8
          %s217 = scalar_lea.vmem [#allocation2], %s216
          %s219 = ssub.s32 128, 128
          %220 = vsyncadd %s214, %s219
          %s221 = smul.addr %s19, 2
          %s222 = smul.addr %s221, 64
          %s223 = scalar_lea.hbm %s0, %s222
          %s225 = sshll.u32 %s217, 4
          %s226 = int_to_ptr.vmem [resolvable:$true] %s225
          %228 = dma.hbm_to_vmem [thread:$0]  %s223, 128, %s226, %s214
        $region36: #{tpu_custom_call.1} parent=31 // pred_fallthru
          _
      $region32: #{tpu_custom_call.1} parent=5 // pred_fallthru
        _
      %p229 = scmp.le.s32.totalorder 1, %s19
      %p230 = scmp.lt.s32.totalorder %s19, 3
      %p231 = pnand %p229, %p230
      %p232 = pneg %p231
      // Predicated region
      $region37: #{tpu_custom_call.1} parent=5 // pred_check
        _
      $region38: #{tpu_custom_call.1} parent=5 // pred_check_branch
        %234 = sbr.rel (%p231) target = $region40
      $region39: #{tpu_custom_call.1} parent=5 // pred_region
        %s235 = ssub.s32 %s19, 1
        %s236 = sand.u32 %s32, 1
        %s237 = scalar_lea.sflag [#allocation3], %s236
        %s238 = sand.u32 %s32, 1
        %s239 = smul.addr %s238, 8
        %s240 = scalar_lea.vmem [#allocation2], %s239
        // Predicated region
        $region41: #{tpu_custom_call.1} parent=39 // pred_check
          %p241 = pneg %p45
        $region42: #{tpu_custom_call.1} parent=39 // pred_check_branch
          %243 = sbr.rel (%p241) target = $region44
        $region43: #{tpu_custom_call.1} parent=39 // pred_region
          %244 = dma.done %s237, 128
        $region44: #{tpu_custom_call.1} parent=39 // pred_fallthru
          _
        // Predicated region
        $region45: #{tpu_custom_call.1} parent=39 // pred_check
          %p245 = pneg %p66
        $region46: #{tpu_custom_call.1} parent=39 // pred_check_branch
          %247 = sbr.rel (%p245) target = $region48
        $region47: #{tpu_custom_call.1} parent=39 // pred_region
          %248 = dma.done [#allocation7], 64
        $region48: #{tpu_custom_call.1} parent=39 // pred_fallthru
          _
        // Predicated region
        $region49: #{tpu_custom_call.1} parent=39 // pred_check
          %p249 = pneg %p108
        $region50: #{tpu_custom_call.1} parent=39 // pred_check_branch
          %251 = sbr.rel (%p249) target = $region52
        $region51: #{tpu_custom_call.1} parent=39 // pred_region
          %252 = dma.done [#allocation7], 256
        $region52: #{tpu_custom_call.1} parent=39 // pred_fallthru
          _
        // Predicated region
        $region53: #{tpu_custom_call.1} parent=39 // pred_check
          %p253 = pneg %p129
        $region54: #{tpu_custom_call.1} parent=39 // pred_check_branch
          %255 = sbr.rel (%p253) target = $region56
        $region55: #{tpu_custom_call.1} parent=39 // pred_region
          %256 = dma.done [#allocation5], 16
        $region56: #{tpu_custom_call.1} parent=39 // pred_fallthru
          _
        %257 = sfence
        %s258 = sand.u32 %s32, 1
        %s259 = scalar_lea.sflag [#allocation3], %s258
        %s260 = sand.u32 %s32, 1
        %s261 = smul.addr %s260, 8
        %s262 = scalar_lea.vmem [#allocation2], %s261
        %p263 = pneg %p45
        %p264 = pneg %p42
        %p265 = pneg %p66
        %p266 = pneg %p63
        %p267 = pneg %p87
        %p268 = pneg %p84
        %p269 = pneg %p108
        %p270 = pneg %p105
        %p271 = pneg %p129
        %p272 = pneg %p126
        %p273 = pneg %p155
        %p274 = pneg %p152
        %s275 = sand.u32 %s142, 1
        %s276 = scalar_lea.sflag [#allocation4], %s275
        %s277 = sand.u32 %s142, 1
        %s278 = smul.addr %s277, 8
        %s279 = scalar_lea.vmem [#allocation10], %s278
        %v280 = vld [vmem:[%s240] sm:$0xff]
        %v282 = vcombine.high %v280, %v280
        %vm284 = vcmask 1043456
        %v285 = vsel %vm284, %v280, 0.0
        %v286 = vsel %vm284, %v282, 0.0
        %v287 = vadd.f32 %v285, %v286
        %288 = vadd.xlane.f32.xlu0 %v287
        %v289 = vpop.xlane.xlu0 %288
        %v290 = vrcp.pop 256.0
        %v291 = vmul.f32 %v289, %v290
        %v292 = vld [vmem:[#allocation6] sm:$0xf]
        %v293 = vld [vmem:[%s2] sm:$0x1]
        %v294 = vmul.f32 %v291, %v292
        %vm295 = vcmask 27648
        %v296 = vsel %vm295, %v294, 0.0
        %v297 = vrot.slane %v296, 4
        %v298 = vadd.f32 %v296, %v297
        %v299 = vrot.slane %v298, 2
        %v300 = vadd.f32 %v298, %v299
        %v301 = vrot.slane %v300, 1
        %v302 = vadd.f32 %v300, %v301
        %v303 = vadd.f32 %v302, %v293
        %v304 = vxor.u32 %v303, 2147483648
        %v305 = vmul.f32 %v304, 1.442695
        %v306 = vpow.pop %v305
        %v307 = vadd.f32 %v306, 1.0
        %v308 = vrcp.pop %v307
        %v309 = vmul.f32 1.0, %v308
        %v310 = vlaneseq
        %v311 = vshrl.u32 %v310, 7
        %v312 = vsub.s32 0, %v311
        %v313 = vrot.slane %v309, %v312
        %315 = vbcast.lane.b32.xlu0 %v313, 256
        %v316 = vpop.permute.xlu0 %315
        %v319 = vunpack.c.l.s4 839922192
        %v320 = vunpack.c.0.s8 %v319
        %v321 = vlaneseq
        %v322 = vshrl.u32 %v321, 7
        %v323 = vsub.s32 %v320, %v322
        %v324 = vrot.slane %v316, %v323
        %v326 = vmul.f32 %v280, %v324
        %v328 = vcombine.high %v326, %v326
        %v330 = vsel %vm284, %v326, 0.0
        %v331 = vrot.slane %v330, 4
        %v332 = vadd.f32 %v330, %v331
        %v333 = vrot.slane %v332, 2
        %v334 = vadd.f32 %v332, %v333
        %v335 = vrot.slane %v334, 1
        %v336 = vadd.f32 %v334, %v335
        %v337 = vsel %vm284, %v328, 0.0
        %v338 = vrot.slane %v337, 4
        %v339 = vadd.f32 %v337, %v338
        %v340 = vrot.slane %v339, 2
        %v341 = vadd.f32 %v339, %v340
        %v342 = vrot.slane %v341, 1
        %v343 = vadd.f32 %v341, %v342
        %v344 = vrcp.pop 4.0
        %v345 = vmul.f32 %v336, %v344
        %v346 = vmul.f32 %v343, %v344
        %v347 = vsel %vm284, %v326, -inf
        %v348 = vrot.slane %v347, 4
        %v349 = vmax.f32 %v347, %v348
        %v350 = vrot.slane %v349, 2
        %v351 = vmax.f32 %v349, %v350
        %v352 = vrot.slane %v351, 1
        %v353 = vmax.f32 %v351, %v352
        %v354 = vsel %vm284, %v328, -inf
        %v355 = vrot.slane %v354, 4
        %v356 = vmax.f32 %v354, %v355
        %v357 = vrot.slane %v356, 2
        %v358 = vmax.f32 %v356, %v357
        %v359 = vrot.slane %v358, 1
        %v360 = vmax.f32 %v358, %v359
        %vm361 = vcmask 1040384
        %v362 = vsel %vm361, %v345, %v353
        %v363 = vsel %vm361, %v346, %v360
        %366 = vrot.lane.b32.xlu0 %v362, 51
        %v367 = vpop.permute.xlu0 %366
        %368 = vrot.lane.b32.xlu0 %v363, 51
        %v369 = vpop.permute.xlu0 %368
        %vm370 = vcmask 416768
        %v371 = vsel %vm370, %v367, %v369
        %v375 = vsel %vm370, 0.0, %v367
        %v376 = vsel %vm370, %v369, 0.0
        %v377 = vlaneseq
        %v378 = vshrl.u32 %v377, 7
        %vm379 = vcmp.ge.s32.totalorder %v378, 1
        %s380 = sld [smem:[#allocation9]]
        %s381 = sld [smem:[#allocation9 + $0x1]]
        %s382 = sld [smem:[#allocation9 + $0x2]]
        %s383 = sld [smem:[#allocation9 + $0x3]]
        %s384 = sld [smem:[#allocation9 + $0x4]]
        %s385 = sld [smem:[#allocation9 + $0x5]]
        %s386 = sld [smem:[#allocation9 + $0x6]]
        %s387 = sld [smem:[#allocation9 + $0x7]]
        %s388 = sld [smem:[#allocation9 + $0x8]]
        %s389 = sld [smem:[#allocation9 + $0x9]]
        %s390 = sld [smem:[#allocation9 + $0xa]]
        %s391 = sld [smem:[#allocation9 + $0xb]]
        %s392 = sld [smem:[#allocation9 + $0xc]]
        %s393 = sld [smem:[#allocation9 + $0xd]]
        %s394 = sld [smem:[#allocation9 + $0xe]]
        %s395 = sld [smem:[#allocation9 + $0xf]]
        %s396 = sld [smem:[#allocation9 + $0x10]]
        %s397 = sld [smem:[#allocation9 + $0x11]]
        %s398 = sld [smem:[#allocation9 + $0x12]]
        %s399 = sld [smem:[#allocation9 + $0x13]]
        %s400 = sld [smem:[#allocation9 + $0x14]]
        %s401 = sld [smem:[#allocation9 + $0x15]]
        %s402 = sld [smem:[#allocation9 + $0x16]]
        %s403 = sld [smem:[#allocation9 + $0x17]]
        %s404 = sld [smem:[#allocation9 + $0x18]]
        %s405 = sld [smem:[#allocation9 + $0x19]]
        %s406 = sld [smem:[#allocation9 + $0x1a]]
        %s407 = sld [smem:[#allocation9 + $0x1b]]
        %s408 = sld [smem:[#allocation9 + $0x1c]]
        %s409 = sld [smem:[#allocation9 + $0x1d]]
        %s410 = sld [smem:[#allocation9 + $0x1e]]
        %s411 = sld [smem:[#allocation9 + $0x1f]]
        %s412 = sld [smem:[#allocation9 + $0x20]]
        %s413 = sld [smem:[#allocation9 + $0x21]]
        %s414 = sld [smem:[#allocation9 + $0x22]]
        %s415 = sld [smem:[#allocation9 + $0x23]]
        %s416 = sld [smem:[#allocation9 + $0x24]]
        %s417 = sld [smem:[#allocation9 + $0x25]]
        %s418 = sld [smem:[#allocation9 + $0x26]]
        %s419 = sld [smem:[#allocation9 + $0x27]]
        %s420 = sld [smem:[#allocation9 + $0x28]]
        %s421 = sld [smem:[#allocation9 + $0x29]]
        %s422 = sld [smem:[#allocation9 + $0x2a]]
        %s423 = sld [smem:[#allocation9 + $0x2b]]
        %s424 = sld [smem:[#allocation9 + $0x2c]]
        %s425 = sld [smem:[#allocation9 + $0x2d]]
        %s426 = sld [smem:[#allocation9 + $0x2e]]
        %s427 = sld [smem:[#allocation9 + $0x2f]]
        %s428 = sld [smem:[#allocation9 + $0x30]]
        %s429 = sld [smem:[#allocation9 + $0x31]]
        %s430 = sld [smem:[#allocation9 + $0x32]]
        %s431 = sld [smem:[#allocation9 + $0x33]]
        %s432 = sld [smem:[#allocation9 + $0x34]]
        %s433 = sld [smem:[#allocation9 + $0x35]]
        %s434 = sld [smem:[#allocation9 + $0x36]]
        %s435 = sld [smem:[#allocation9 + $0x37]]
        %s436 = sld [smem:[#allocation9 + $0x38]]
        %s437 = sld [smem:[#allocation9 + $0x39]]
        %s438 = sld [smem:[#allocation9 + $0x3a]]
        %s439 = sld [smem:[#allocation9 + $0x3b]]
        %s440 = sld [smem:[#allocation9 + $0x3c]]
        %s441 = sld [smem:[#allocation9 + $0x3d]]
        %s442 = sld [smem:[#allocation9 + $0x3e]]
        %s443 = sld [smem:[#allocation9 + $0x3f]]
        %s444 = sld [smem:[#allocation9 + $0x40]]
        %s445 = sld [smem:[#allocation9 + $0x41]]
        %s446 = sld [smem:[#allocation9 + $0x42]]
        %s447 = sld [smem:[#allocation9 + $0x43]]
        %s448 = sld [smem:[#allocation9 + $0x44]]
        %s449 = sld [smem:[#allocation9 + $0x45]]
        %s450 = sld [smem:[#allocation9 + $0x46]]
        %s451 = sld [smem:[#allocation9 + $0x47]]
        %s452 = sld [smem:[#allocation9 + $0x48]]
        %s453 = sld [smem:[#allocation9 + $0x49]]
        %s454 = sld [smem:[#allocation9 + $0x4a]]
        %s455 = sld [smem:[#allocation9 + $0x4b]]
        %s456 = sld [smem:[#allocation9 + $0x4c]]
        %s457 = sld [smem:[#allocation9 + $0x4d]]
        %s458 = sld [smem:[#allocation9 + $0x4e]]
        %s459 = sld [smem:[#allocation9 + $0x4f]]
        %s460 = sld [smem:[#allocation9 + $0x50]]
        %s461 = sld [smem:[#allocation9 + $0x51]]
        %s462 = sld [smem:[#allocation9 + $0x52]]
        %s463 = sld [smem:[#allocation9 + $0x53]]
        %s464 = sld [smem:[#allocation9 + $0x54]]
        %s465 = sld [smem:[#allocation9 + $0x55]]
        %s466 = sld [smem:[#allocation9 + $0x56]]
        %s467 = sld [smem:[#allocation9 + $0x57]]
        %s468 = sld [smem:[#allocation9 + $0x58]]
        %s469 = sld [smem:[#allocation9 + $0x59]]
        %s470 = sld [smem:[#allocation9 + $0x5a]]
        %s471 = sld [smem:[#allocation9 + $0x5b]]
        %s472 = sld [smem:[#allocation9 + $0x5c]]
        %s473 = sld [smem:[#allocation9 + $0x5d]]
        %s474 = sld [smem:[#allocation9 + $0x5e]]
        %s475 = sld [smem:[#allocation9 + $0x5f]]
        %s476 = sld [smem:[#allocation9 + $0x60]]
        %s477 = sld [smem:[#allocation9 + $0x61]]
        %v478 = vstv %s429
        %v479 = vstv %s380
        %v480 = vsel %vm379, %v478, %v479
        %v481 = vmul.f32 %v480, %v375
        %v482 = vmul.f32 %v480, %v371
        %v483 = vstv %s436
        %v484 = vstv %s387
        %v485 = vsel %vm379, %v483, %v484
        %v486 = vmul.f32 %v485, %v375
        %v487 = vmul.f32 %v485, %v371
        %v488 = vmul.f32 %v485, %v376
        %492 = vrot.lane.b32.xlu0 %v486, 112
        %v493 = vpop.permute.xlu0 %492
        %494 = vrot.lane.b32.xlu0 %v487, 112
        %v495 = vpop.permute.xlu0 %494
        %496 = vrot.lane.b32.xlu0 %v488, 112
        %v497 = vpop.permute.xlu0 %496
        %vm498 = vcmask 916480
        %v499 = vsel %vm498, %v493, %v495
        %v500 = vsel %vm498, %v495, %v497
        %v503 = vadd.f32 %v481, %v499
        %v504 = vadd.f32 %v482, %v500
        %v505 = vstv %s443
        %v506 = vstv %s394
        %v507 = vsel %vm379, %v505, %v506
        %v508 = vmul.f32 %v507, %v375
        %v509 = vmul.f32 %v507, %v371
        %v510 = vmul.f32 %v507, %v376
        %514 = vrot.lane.b32.xlu0 %v508, 96
        %v515 = vpop.permute.xlu0 %514
        %516 = vrot.lane.b32.xlu0 %v509, 96
        %v517 = vpop.permute.xlu0 %516
        %518 = vrot.lane.b32.xlu0 %v510, 96
        %v519 = vpop.permute.xlu0 %518
        %vm520 = vcmask 785408
        %v521 = vsel %vm520, %v515, %v517
        %v522 = vsel %vm520, %v517, %v519
        %v525 = vadd.f32 %v503, %v521
        %v526 = vadd.f32 %v504, %v522
        %v527 = vstv %s450
        %v528 = vstv %s401
        %v529 = vsel %vm379, %v527, %v528
        %v530 = vmul.f32 %v529, %v375
        %v531 = vmul.f32 %v529, %v371
        %v532 = vmul.f32 %v529, %v376
        %536 = vrot.lane.b32.xlu0 %v530, 80
        %v537 = vpop.permute.xlu0 %536
        %538 = vrot.lane.b32.xlu0 %v531, 80
        %v539 = vpop.permute.xlu0 %538
        %540 = vrot.lane.b32.xlu0 %v532, 80
        %v541 = vpop.permute.xlu0 %540
        %vm542 = vcmask 654336
        %v543 = vsel %vm542, %v537, %v539
        %v544 = vsel %vm542, %v539, %v541
        %v547 = vadd.f32 %v525, %v543
        %v548 = vadd.f32 %v526, %v544
        %v549 = vstv %s457
        %v550 = vstv %s408
        %v551 = vsel %vm379, %v549, %v550
        %v552 = vmul.f32 %v551, %v375
        %v553 = vmul.f32 %v551, %v371
        %v554 = vmul.f32 %v551, %v376
        %558 = vrot.lane.b32.xlu0 %v552, 64
        %v559 = vpop.permute.xlu0 %558
        %560 = vrot.lane.b32.xlu0 %v553, 64
        %v561 = vpop.permute.xlu0 %560
        %562 = vrot.lane.b32.xlu0 %v554, 64
        %v563 = vpop.permute.xlu0 %562
        %vm564 = vcmask 523264
        %v565 = vsel %vm564, %v559, %v561
        %v566 = vsel %vm564, %v561, %v563
        %v569 = vadd.f32 %v547, %v565
        %v570 = vadd.f32 %v548, %v566
        %v571 = vstv %s464
        %v572 = vstv %s415
        %v573 = vsel %vm379, %v571, %v572
        %v574 = vmul.f32 %v573, %v375
        %v575 = vmul.f32 %v573, %v371
        %v576 = vmul.f32 %v573, %v376
        %580 = vrot.lane.b32.xlu0 %v574, 48
        %v581 = vpop.permute.xlu0 %580
        %582 = vrot.lane.b32.xlu0 %v575, 48
        %v583 = vpop.permute.xlu0 %582
        %584 = vrot.lane.b32.xlu0 %v576, 48
        %v585 = vpop.permute.xlu0 %584
        %vm586 = vcmask 392192
        %v587 = vsel %vm586, %v581, %v583
        %v588 = vsel %vm586, %v583, %v585
        %v591 = vadd.f32 %v569, %v587
        %v592 = vadd.f32 %v570, %v588
        %v593 = vstv %s471
        %v594 = vstv %s422
        %v595 = vsel %vm379, %v593, %v594
        %v596 = vmul.f32 %v595, %v375
        %v597 = vmul.f32 %v595, %v371
        %v598 = vmul.f32 %v595, %v376
        %602 = vrot.lane.b32.xlu0 %v596, 32
        %v603 = vpop.permute.xlu0 %602
        %604 = vrot.lane.b32.xlu0 %v597, 32
        %v605 = vpop.permute.xlu0 %604
        %606 = vrot.lane.b32.xlu0 %v598, 32
        %v607 = vpop.permute.xlu0 %606
        %vm608 = vcmask 261120
        %v609 = vsel %vm608, %v603, %v605
        %v610 = vsel %vm608, %v605, %v607
        %v613 = vadd.f32 %v591, %v609
        %v614 = vadd.f32 %v592, %v610
        %v615 = vld [vmem:[#allocation8] ss:$8 sm:$0x3]
        %v617 = vlaneseq
        %v618 = vshrl.u32 %v617, 7
        %v619 = vsub.s32 0, %v618
        %v620 = vrot.slane %v615, %v619
        %v621 = vlaneseq
        %v622 = vshrl.u32 %v621, 7
        %v623 = vsub.s32 1, %v622
        %v624 = vrot.slane %v615, %v623
        %v627 = vmul.f32 %v620, %v613
        %v628 = vmul.f32 %v624, %v614
        %v629 = vstv %s430
        %v630 = vstv %s381
        %v631 = vsel %vm379, %v629, %v630
        %v632 = vmul.f32 %v631, %v375
        %v633 = vmul.f32 %v631, %v371
        %v634 = vmul.f32 %v631, %v376
        %v635 = vstv %s437
        %v636 = vstv %s388
        %v637 = vsel %vm379, %v635, %v636
        %v638 = vmul.f32 %v637, %v375
        %v639 = vmul.f32 %v637, %v371
        %v640 = vmul.f32 %v637, %v376
        %644 = vrot.lane.b32.xlu0 %v638, 112
        %v645 = vpop.permute.xlu0 %644
        %646 = vrot.lane.b32.xlu0 %v639, 112
        %v647 = vpop.permute.xlu0 %646
        %648 = vrot.lane.b32.xlu0 %v640, 112
        %v649 = vpop.permute.xlu0 %648
        %v650 = vsel %vm498, %v645, %v647
        %v651 = vsel %vm498, %v647, %v649
        %v655 = vadd.f32 %v632, %v650
        %v656 = vadd.f32 %v633, %v651
        %v657 = vadd.f32 %v634, %v649
        %v658 = vstv %s444
        %v659 = vstv %s395
        %v660 = vsel %vm379, %v658, %v659
        %v661 = vmul.f32 %v660, %v375
        %v662 = vmul.f32 %v660, %v371
        %v663 = vmul.f32 %v660, %v376
        %667 = vrot.lane.b32.xlu0 %v661, 96
        %v668 = vpop.permute.xlu0 %667
        %669 = vrot.lane.b32.xlu0 %v662, 96
        %v670 = vpop.permute.xlu0 %669
        %671 = vrot.lane.b32.xlu0 %v663, 96
        %v672 = vpop.permute.xlu0 %671
        %v673 = vsel %vm520, %v668, %v670
        %v674 = vsel %vm520, %v670, %v672
        %v678 = vadd.f32 %v655, %v673
        %v679 = vadd.f32 %v656, %v674
        %v680 = vadd.f32 %v657, %v672
        %v681 = vstv %s451
        %v682 = vstv %s402
        %v683 = vsel %vm379, %v681, %v682
        %v684 = vmul.f32 %v683, %v375
        %v685 = vmul.f32 %v683, %v371
        %v686 = vmul.f32 %v683, %v376
        %690 = vrot.lane.b32.xlu0 %v684, 80
        %v691 = vpop.permute.xlu0 %690
        %692 = vrot.lane.b32.xlu0 %v685, 80
        %v693 = vpop.permute.xlu0 %692
        %694 = vrot.lane.b32.xlu0 %v686, 80
        %v695 = vpop.permute.xlu0 %694
        %v696 = vsel %vm542, %v691, %v693
        %v697 = vsel %vm542, %v693, %v695
        %v701 = vadd.f32 %v678, %v696
        %v702 = vadd.f32 %v679, %v697
        %v703 = vadd.f32 %v680, %v695
        %v704 = vstv %s458
        %v705 = vstv %s409
        %v706 = vsel %vm379, %v704, %v705
        %v707 = vmul.f32 %v706, %v375
        %v708 = vmul.f32 %v706, %v371
        %v709 = vmul.f32 %v706, %v376
        %713 = vrot.lane.b32.xlu0 %v707, 64
        %v714 = vpop.permute.xlu0 %713
        %715 = vrot.lane.b32.xlu0 %v708, 64
        %v716 = vpop.permute.xlu0 %715
        %717 = vrot.lane.b32.xlu0 %v709, 64
        %v718 = vpop.permute.xlu0 %717
        %v719 = vsel %vm564, %v714, %v716
        %v720 = vsel %vm564, %v716, %v718
        %v724 = vadd.f32 %v701, %v719
        %v725 = vadd.f32 %v702, %v720
        %v726 = vadd.f32 %v703, %v718
        %v727 = vstv %s465
        %v728 = vstv %s416
        %v729 = vsel %vm379, %v727, %v728
        %v730 = vmul.f32 %v729, %v375
        %v731 = vmul.f32 %v729, %v371
        %v732 = vmul.f32 %v729, %v376
        %736 = vrot.lane.b32.xlu0 %v730, 48
        %v737 = vpop.permute.xlu0 %736
        %738 = vrot.lane.b32.xlu0 %v731, 48
        %v739 = vpop.permute.xlu0 %738
        %740 = vrot.lane.b32.xlu0 %v732, 48
        %v741 = vpop.permute.xlu0 %740
        %v742 = vsel %vm586, %v737, %v739
        %v743 = vsel %vm586, %v739, %v741
        %v747 = vadd.f32 %v724, %v742
        %v748 = vadd.f32 %v725, %v743
        %v749 = vadd.f32 %v726, %v741
        %v750 = vstv %s472
        %v751 = vstv %s423
        %v752 = vsel %vm379, %v750, %v751
        %v753 = vmul.f32 %v752, %v375
        %v754 = vmul.f32 %v752, %v371
        %v755 = vmul.f32 %v752, %v376
        %759 = vrot.lane.b32.xlu0 %v753, 32
        %v760 = vpop.permute.xlu0 %759
        %761 = vrot.lane.b32.xlu0 %v754, 32
        %v762 = vpop.permute.xlu0 %761
        %763 = vrot.lane.b32.xlu0 %v755, 32
        %v764 = vpop.permute.xlu0 %763
        %v765 = vsel %vm608, %v760, %v762
        %v766 = vsel %vm608, %v762, %v764
        %v770 = vadd.f32 %v747, %v765
        %v771 = vadd.f32 %v748, %v766
        %v772 = vadd.f32 %v749, %v764
        %s773 = scalar_lea.vmem [#allocation8], 1
        %v774 = vld [vmem:[%s773] ss:$8 sm:$0x3]
        %v776 = vlaneseq
        %v777 = vshrl.u32 %v776, 7
        %v778 = vsub.s32 0, %v777
        %v779 = vrot.slane %v774, %v778
        %v780 = vlaneseq
        %v781 = vshrl.u32 %v780, 7
        %v782 = vsub.s32 1, %v781
        %v783 = vrot.slane %v774, %v782
        %789 = vrot.lane.b32.xlu0 %v770, 127
        %v790 = vpop.permute.xlu0 %789
        %791 = vrot.lane.b32.xlu0 %v771, 127
        %v792 = vpop.permute.xlu0 %791
        %793 = vrot.lane.b32.xlu0 %v772, 127
        %v794 = vpop.permute.xlu0 %793
        %vm795 = vcmask 1039360
        %v796 = vsel %vm795, %v790, %v792
        %v797 = vsel %vm795, %v792, %v794
        %v800 = vmul.f32 %v779, %v796
        %v801 = vmul.f32 %v783, %v797
        %v802 = vadd.f32 %v627, %v800
        %v803 = vadd.f32 %v628, %v801
        %v804 = vstv %s431
        %v805 = vstv %s382
        %v806 = vsel %vm379, %v804, %v805
        %v807 = vmul.f32 %v806, %v375
        %v808 = vmul.f32 %v806, %v371
        %v809 = vmul.f32 %v806, %v376
        %v810 = vstv %s438
        %v811 = vstv %s389
        %v812 = vsel %vm379, %v810, %v811
        %v813 = vmul.f32 %v812, %v375
        %v814 = vmul.f32 %v812, %v371
        %v815 = vmul.f32 %v812, %v376
        %819 = vrot.lane.b32.xlu0 %v813, 112
        %v820 = vpop.permute.xlu0 %819
        %821 = vrot.lane.b32.xlu0 %v814, 112
        %v822 = vpop.permute.xlu0 %821
        %823 = vrot.lane.b32.xlu0 %v815, 112
        %v824 = vpop.permute.xlu0 %823
        %v825 = vsel %vm498, %v820, %v822
        %v826 = vsel %vm498, %v822, %v824
        %v830 = vadd.f32 %v807, %v825
        %v831 = vadd.f32 %v808, %v826
        %v832 = vadd.f32 %v809, %v824
        %v833 = vstv %s445
        %v834 = vstv %s396
        %v835 = vsel %vm379, %v833, %v834
        %v836 = vmul.f32 %v835, %v375
        %v837 = vmul.f32 %v835, %v371
        %v838 = vmul.f32 %v835, %v376
        %842 = vrot.lane.b32.xlu0 %v836, 96
        %v843 = vpop.permute.xlu0 %842
        %844 = vrot.lane.b32.xlu0 %v837, 96
        %v845 = vpop.permute.xlu0 %844
        %846 = vrot.lane.b32.xlu0 %v838, 96
        %v847 = vpop.permute.xlu0 %846
        %v848 = vsel %vm520, %v843, %v845
        %v849 = vsel %vm520, %v845, %v847
        %v853 = vadd.f32 %v830, %v848
        %v854 = vadd.f32 %v831, %v849
        %v855 = vadd.f32 %v832, %v847
        %v856 = vstv %s452
        %v857 = vstv %s403
        %v858 = vsel %vm379, %v856, %v857
        %v859 = vmul.f32 %v858, %v375
        %v860 = vmul.f32 %v858, %v371
        %v861 = vmul.f32 %v858, %v376
        %865 = vrot.lane.b32.xlu0 %v859, 80
        %v866 = vpop.permute.xlu0 %865
        %867 = vrot.lane.b32.xlu0 %v860, 80
        %v868 = vpop.permute.xlu0 %867
        %869 = vrot.lane.b32.xlu0 %v861, 80
        %v870 = vpop.permute.xlu0 %869
        %v871 = vsel %vm542, %v866, %v868
        %v872 = vsel %vm542, %v868, %v870
        %v876 = vadd.f32 %v853, %v871
        %v877 = vadd.f32 %v854, %v872
        %v878 = vadd.f32 %v855, %v870
        %v879 = vstv %s459
        %v880 = vstv %s410
        %v881 = vsel %vm379, %v879, %v880
        %v882 = vmul.f32 %v881, %v375
        %v883 = vmul.f32 %v881, %v371
        %v884 = vmul.f32 %v881, %v376
        %888 = vrot.lane.b32.xlu0 %v882, 64
        %v889 = vpop.permute.xlu0 %888
        %890 = vrot.lane.b32.xlu0 %v883, 64
        %v891 = vpop.permute.xlu0 %890
        %892 = vrot.lane.b32.xlu0 %v884, 64
        %v893 = vpop.permute.xlu0 %892
        %v894 = vsel %vm564, %v889, %v891
        %v895 = vsel %vm564, %v891, %v893
        %v899 = vadd.f32 %v876, %v894
        %v900 = vadd.f32 %v877, %v895
        %v901 = vadd.f32 %v878, %v893
        %v902 = vstv %s466
        %v903 = vstv %s417
        %v904 = vsel %vm379, %v902, %v903
        %v905 = vmul.f32 %v904, %v375
        %v906 = vmul.f32 %v904, %v371
        %v907 = vmul.f32 %v904, %v376
        %911 = vrot.lane.b32.xlu0 %v905, 48
        %v912 = vpop.permute.xlu0 %911
        %913 = vrot.lane.b32.xlu0 %v906, 48
        %v914 = vpop.permute.xlu0 %913
        %915 = vrot.lane.b32.xlu0 %v907, 48
        %v916 = vpop.permute.xlu0 %915
        %v917 = vsel %vm586, %v912, %v914
        %v918 = vsel %vm586, %v914, %v916
        %v922 = vadd.f32 %v899, %v917
        %v923 = vadd.f32 %v900, %v918
        %v924 = vadd.f32 %v901, %v916
        %v925 = vstv %s473
        %v926 = vstv %s424
        %v927 = vsel %vm379, %v925, %v926
        %v928 = vmul.f32 %v927, %v375
        %v929 = vmul.f32 %v927, %v371
        %v930 = vmul.f32 %v927, %v376
        %934 = vrot.lane.b32.xlu0 %v928, 32
        %v935 = vpop.permute.xlu0 %934
        %936 = vrot.lane.b32.xlu0 %v929, 32
        %v937 = vpop.permute.xlu0 %936
        %938 = vrot.lane.b32.xlu0 %v930, 32
        %v939 = vpop.permute.xlu0 %938
        %v940 = vsel %vm608, %v935, %v937
        %v941 = vsel %vm608, %v937, %v939
        %v945 = vadd.f32 %v922, %v940
        %v946 = vadd.f32 %v923, %v941
        %v947 = vadd.f32 %v924, %v939
        %s948 = scalar_lea.vmem [#allocation8], 2
        %v949 = vld [vmem:[%s948] ss:$8 sm:$0x3]
        %v951 = vlaneseq
        %v952 = vshrl.u32 %v951, 7
        %v953 = vsub.s32 0, %v952
        %v954 = vrot.slane %v949, %v953
        %v955 = vlaneseq
        %v956 = vshrl.u32 %v955, 7
        %v957 = vsub.s32 1, %v956
        %v958 = vrot.slane %v949, %v957
        %964 = vrot.lane.b32.xlu0 %v945, 126
        %v965 = vpop.permute.xlu0 %964
        %966 = vrot.lane.b32.xlu0 %v946, 126
        %v967 = vpop.permute.xlu0 %966
        %968 = vrot.lane.b32.xlu0 %v947, 126
        %v969 = vpop.permute.xlu0 %968
        %vm970 = vcmask 1031168
        %v971 = vsel %vm970, %v965, %v967
        %v972 = vsel %vm970, %v967, %v969
        %v975 = vmul.f32 %v954, %v971
        %v976 = vmul.f32 %v958, %v972
        %v977 = vadd.f32 %v802, %v975
        %v978 = vadd.f32 %v803, %v976
        %v979 = vstv %s432
        %v980 = vstv %s383
        %v981 = vsel %vm379, %v979, %v980
        %v982 = vmul.f32 %v981, %v375
        %v983 = vmul.f32 %v981, %v371
        %v984 = vmul.f32 %v981, %v376
        %v985 = vstv %s439
        %v986 = vstv %s390
        %v987 = vsel %vm379, %v985, %v986
        %v988 = vmul.f32 %v987, %v375
        %v989 = vmul.f32 %v987, %v371
        %v990 = vmul.f32 %v987, %v376
        %994 = vrot.lane.b32.xlu0 %v988, 112
        %v995 = vpop.permute.xlu0 %994
        %996 = vrot.lane.b32.xlu0 %v989, 112
        %v997 = vpop.permute.xlu0 %996
        %998 = vrot.lane.b32.xlu0 %v990, 112
        %v999 = vpop.permute.xlu0 %998
        %v1000 = vsel %vm498, %v995, %v997
        %v1001 = vsel %vm498, %v997, %v999
        %v1005 = vadd.f32 %v982, %v1000
        %v1006 = vadd.f32 %v983, %v1001
        %v1007 = vadd.f32 %v984, %v999
        %v1008 = vstv %s446
        %v1009 = vstv %s397
        %v1010 = vsel %vm379, %v1008, %v1009
        %v1011 = vmul.f32 %v1010, %v375
        %v1012 = vmul.f32 %v1010, %v371
        %v1013 = vmul.f32 %v1010, %v376
        %1017 = vrot.lane.b32.xlu0 %v1011, 96
        %v1018 = vpop.permute.xlu0 %1017
        %1019 = vrot.lane.b32.xlu0 %v1012, 96
        %v1020 = vpop.permute.xlu0 %1019
        %1021 = vrot.lane.b32.xlu0 %v1013, 96
        %v1022 = vpop.permute.xlu0 %1021
        %v1023 = vsel %vm520, %v1018, %v1020
        %v1024 = vsel %vm520, %v1020, %v1022
        %v1028 = vadd.f32 %v1005, %v1023
        %v1029 = vadd.f32 %v1006, %v1024
        %v1030 = vadd.f32 %v1007, %v1022
        %v1031 = vstv %s453
        %v1032 = vstv %s404
        %v1033 = vsel %vm379, %v1031, %v1032
        %v1034 = vmul.f32 %v1033, %v375
        %v1035 = vmul.f32 %v1033, %v371
        %v1036 = vmul.f32 %v1033, %v376
        %1040 = vrot.lane.b32.xlu0 %v1034, 80
        %v1041 = vpop.permute.xlu0 %1040
        %1042 = vrot.lane.b32.xlu0 %v1035, 80
        %v1043 = vpop.permute.xlu0 %1042
        %1044 = vrot.lane.b32.xlu0 %v1036, 80
        %v1045 = vpop.permute.xlu0 %1044
        %v1046 = vsel %vm542, %v1041, %v1043
        %v1047 = vsel %vm542, %v1043, %v1045
        %v1051 = vadd.f32 %v1028, %v1046
        %v1052 = vadd.f32 %v1029, %v1047
        %v1053 = vadd.f32 %v1030, %v1045
        %v1054 = vstv %s460
        %v1055 = vstv %s411
        %v1056 = vsel %vm379, %v1054, %v1055
        %v1057 = vmul.f32 %v1056, %v375
        %v1058 = vmul.f32 %v1056, %v371
        %v1059 = vmul.f32 %v1056, %v376
        %1063 = vrot.lane.b32.xlu0 %v1057, 64
        %v1064 = vpop.permute.xlu0 %1063
        %1065 = vrot.lane.b32.xlu0 %v1058, 64
        %v1066 = vpop.permute.xlu0 %1065
        %1067 = vrot.lane.b32.xlu0 %v1059, 64
        %v1068 = vpop.permute.xlu0 %1067
        %v1069 = vsel %vm564, %v1064, %v1066
        %v1070 = vsel %vm564, %v1066, %v1068
        %v1074 = vadd.f32 %v1051, %v1069
        %v1075 = vadd.f32 %v1052, %v1070
        %v1076 = vadd.f32 %v1053, %v1068
        %v1077 = vstv %s467
        %v1078 = vstv %s418
        %v1079 = vsel %vm379, %v1077, %v1078
        %v1080 = vmul.f32 %v1079, %v375
        %v1081 = vmul.f32 %v1079, %v371
        %v1082 = vmul.f32 %v1079, %v376
        %1086 = vrot.lane.b32.xlu0 %v1080, 48
        %v1087 = vpop.permute.xlu0 %1086
        %1088 = vrot.lane.b32.xlu0 %v1081, 48
        %v1089 = vpop.permute.xlu0 %1088
        %1090 = vrot.lane.b32.xlu0 %v1082, 48
        %v1091 = vpop.permute.xlu0 %1090
        %v1092 = vsel %vm586, %v1087, %v1089
        %v1093 = vsel %vm586, %v1089, %v1091
        %v1097 = vadd.f32 %v1074, %v1092
        %v1098 = vadd.f32 %v1075, %v1093
        %v1099 = vadd.f32 %v1076, %v1091
        %v1100 = vstv %s474
        %v1101 = vstv %s425
        %v1102 = vsel %vm379, %v1100, %v1101
        %v1103 = vmul.f32 %v1102, %v375
        %v1104 = vmul.f32 %v1102, %v371
        %v1105 = vmul.f32 %v1102, %v376
        %1109 = vrot.lane.b32.xlu0 %v1103, 32
        %v1110 = vpop.permute.xlu0 %1109
        %1111 = vrot.lane.b32.xlu0 %v1104, 32
        %v1112 = vpop.permute.xlu0 %1111
        %1113 = vrot.lane.b32.xlu0 %v1105, 32
        %v1114 = vpop.permute.xlu0 %1113
        %v1115 = vsel %vm608, %v1110, %v1112
        %v1116 = vsel %vm608, %v1112, %v1114
        %v1120 = vadd.f32 %v1097, %v1115
        %v1121 = vadd.f32 %v1098, %v1116
        %v1122 = vadd.f32 %v1099, %v1114
        %s1123 = scalar_lea.vmem [#allocation8], 3
        %v1124 = vld [vmem:[%s1123] ss:$8 sm:$0x3]
        %v1126 = vlaneseq
        %v1127 = vshrl.u32 %v1126, 7
        %v1128 = vsub.s32 0, %v1127
        %v1129 = vrot.slane %v1124, %v1128
        %v1130 = vlaneseq
        %v1131 = vshrl.u32 %v1130, 7
        %v1132 = vsub.s32 1, %v1131
        %v1133 = vrot.slane %v1124, %v1132
        %1139 = vrot.lane.b32.xlu0 %v1120, 125
        %v1140 = vpop.permute.xlu0 %1139
        %1141 = vrot.lane.b32.xlu0 %v1121, 125
        %v1142 = vpop.permute.xlu0 %1141
        %1143 = vrot.lane.b32.xlu0 %v1122, 125
        %v1144 = vpop.permute.xlu0 %1143
        %vm1145 = vcmask 1022976
        %v1146 = vsel %vm1145, %v1140, %v1142
        %v1147 = vsel %vm1145, %v1142, %v1144
        %v1150 = vmul.f32 %v1129, %v1146
        %v1151 = vmul.f32 %v1133, %v1147
        %v1152 = vadd.f32 %v977, %v1150
        %v1153 = vadd.f32 %v978, %v1151
        %v1154 = vstv %s433
        %v1155 = vstv %s384
        %v1156 = vsel %vm379, %v1154, %v1155
        %v1157 = vmul.f32 %v1156, %v375
        %v1158 = vmul.f32 %v1156, %v371
        %v1159 = vmul.f32 %v1156, %v376
        %v1160 = vstv %s440
        %v1161 = vstv %s391
        %v1162 = vsel %vm379, %v1160, %v1161
        %v1163 = vmul.f32 %v1162, %v375
        %v1164 = vmul.f32 %v1162, %v371
        %v1165 = vmul.f32 %v1162, %v376
        %1169 = vrot.lane.b32.xlu0 %v1163, 112
        %v1170 = vpop.permute.xlu0 %1169
        %1171 = vrot.lane.b32.xlu0 %v1164, 112
        %v1172 = vpop.permute.xlu0 %1171
        %1173 = vrot.lane.b32.xlu0 %v1165, 112
        %v1174 = vpop.permute.xlu0 %1173
        %v1175 = vsel %vm498, %v1170, %v1172
        %v1176 = vsel %vm498, %v1172, %v1174
        %v1180 = vadd.f32 %v1157, %v1175
        %v1181 = vadd.f32 %v1158, %v1176
        %v1182 = vadd.f32 %v1159, %v1174
        %v1183 = vstv %s447
        %v1184 = vstv %s398
        %v1185 = vsel %vm379, %v1183, %v1184
        %v1186 = vmul.f32 %v1185, %v375
        %v1187 = vmul.f32 %v1185, %v371
        %v1188 = vmul.f32 %v1185, %v376
        %1192 = vrot.lane.b32.xlu0 %v1186, 96
        %v1193 = vpop.permute.xlu0 %1192
        %1194 = vrot.lane.b32.xlu0 %v1187, 96
        %v1195 = vpop.permute.xlu0 %1194
        %1196 = vrot.lane.b32.xlu0 %v1188, 96
        %v1197 = vpop.permute.xlu0 %1196
        %v1198 = vsel %vm520, %v1193, %v1195
        %v1199 = vsel %vm520, %v1195, %v1197
        %v1203 = vadd.f32 %v1180, %v1198
        %v1204 = vadd.f32 %v1181, %v1199
        %v1205 = vadd.f32 %v1182, %v1197
        %v1206 = vstv %s454
        %v1207 = vstv %s405
        %v1208 = vsel %vm379, %v1206, %v1207
        %v1209 = vmul.f32 %v1208, %v375
        %v1210 = vmul.f32 %v1208, %v371
        %v1211 = vmul.f32 %v1208, %v376
        %1215 = vrot.lane.b32.xlu0 %v1209, 80
        %v1216 = vpop.permute.xlu0 %1215
        %1217 = vrot.lane.b32.xlu0 %v1210, 80
        %v1218 = vpop.permute.xlu0 %1217
        %1219 = vrot.lane.b32.xlu0 %v1211, 80
        %v1220 = vpop.permute.xlu0 %1219
        %v1221 = vsel %vm542, %v1216, %v1218
        %v1222 = vsel %vm542, %v1218, %v1220
        %v1226 = vadd.f32 %v1203, %v1221
        %v1227 = vadd.f32 %v1204, %v1222
        %v1228 = vadd.f32 %v1205, %v1220
        %v1229 = vstv %s461
        %v1230 = vstv %s412
        %v1231 = vsel %vm379, %v1229, %v1230
        %v1232 = vmul.f32 %v1231, %v375
        %v1233 = vmul.f32 %v1231, %v371
        %v1234 = vmul.f32 %v1231, %v376
        %1238 = vrot.lane.b32.xlu0 %v1232, 64
        %v1239 = vpop.permute.xlu0 %1238
        %1240 = vrot.lane.b32.xlu0 %v1233, 64
        %v1241 = vpop.permute.xlu0 %1240
        %1242 = vrot.lane.b32.xlu0 %v1234, 64
        %v1243 = vpop.permute.xlu0 %1242
        %v1244 = vsel %vm564, %v1239, %v1241
        %v1245 = vsel %vm564, %v1241, %v1243
        %v1249 = vadd.f32 %v1226, %v1244
        %v1250 = vadd.f32 %v1227, %v1245
        %v1251 = vadd.f32 %v1228, %v1243
        %v1252 = vstv %s468
        %v1253 = vstv %s419
        %v1254 = vsel %vm379, %v1252, %v1253
        %v1255 = vmul.f32 %v1254, %v375
        %v1256 = vmul.f32 %v1254, %v371
        %v1257 = vmul.f32 %v1254, %v376
        %1261 = vrot.lane.b32.xlu0 %v1255, 48
        %v1262 = vpop.permute.xlu0 %1261
        %1263 = vrot.lane.b32.xlu0 %v1256, 48
        %v1264 = vpop.permute.xlu0 %1263
        %1265 = vrot.lane.b32.xlu0 %v1257, 48
        %v1266 = vpop.permute.xlu0 %1265
        %v1267 = vsel %vm586, %v1262, %v1264
        %v1268 = vsel %vm586, %v1264, %v1266
        %v1272 = vadd.f32 %v1249, %v1267
        %v1273 = vadd.f32 %v1250, %v1268
        %v1274 = vadd.f32 %v1251, %v1266
        %v1275 = vstv %s475
        %v1276 = vstv %s426
        %v1277 = vsel %vm379, %v1275, %v1276
        %v1278 = vmul.f32 %v1277, %v375
        %v1279 = vmul.f32 %v1277, %v371
        %v1280 = vmul.f32 %v1277, %v376
        %1284 = vrot.lane.b32.xlu0 %v1278, 32
        %v1285 = vpop.permute.xlu0 %1284
        %1286 = vrot.lane.b32.xlu0 %v1279, 32
        %v1287 = vpop.permute.xlu0 %1286
        %1288 = vrot.lane.b32.xlu0 %v1280, 32
        %v1289 = vpop.permute.xlu0 %1288
        %v1290 = vsel %vm608, %v1285, %v1287
        %v1291 = vsel %vm608, %v1287, %v1289
        %v1295 = vadd.f32 %v1272, %v1290
        %v1296 = vadd.f32 %v1273, %v1291
        %v1297 = vadd.f32 %v1274, %v1289
        %s1298 = scalar_lea.vmem [#allocation8], 4
        %v1299 = vld [vmem:[%s1298] ss:$8 sm:$0x3]
        %v1301 = vlaneseq
        %v1302 = vshrl.u32 %v1301, 7
        %v1303 = vsub.s32 0, %v1302
        %v1304 = vrot.slane %v1299, %v1303
        %v1305 = vlaneseq
        %v1306 = vshrl.u32 %v1305, 7
        %v1307 = vsub.s32 1, %v1306
        %v1308 = vrot.slane %v1299, %v1307
        %1314 = vrot.lane.b32.xlu0 %v1295, 124
        %v1315 = vpop.permute.xlu0 %1314
        %1316 = vrot.lane.b32.xlu0 %v1296, 124
        %v1317 = vpop.permute.xlu0 %1316
        %1318 = vrot.lane.b32.xlu0 %v1297, 124
        %v1319 = vpop.permute.xlu0 %1318
        %vm1320 = vcmask 1014784
        %v1321 = vsel %vm1320, %v1315, %v1317
        %v1322 = vsel %vm1320, %v1317, %v1319
        %v1325 = vmul.f32 %v1304, %v1321
        %v1326 = vmul.f32 %v1308, %v1322
        %v1327 = vadd.f32 %v1152, %v1325
        %v1328 = vadd.f32 %v1153, %v1326
        %v1329 = vstv %s434
        %v1330 = vstv %s385
        %v1331 = vsel %vm379, %v1329, %v1330
        %v1332 = vmul.f32 %v1331, %v375
        %v1333 = vmul.f32 %v1331, %v371
        %v1334 = vmul.f32 %v1331, %v376
        %v1335 = vstv %s441
        %v1336 = vstv %s392
        %v1337 = vsel %vm379, %v1335, %v1336
        %v1338 = vmul.f32 %v1337, %v375
        %v1339 = vmul.f32 %v1337, %v371
        %v1340 = vmul.f32 %v1337, %v376
        %1344 = vrot.lane.b32.xlu0 %v1338, 112
        %v1345 = vpop.permute.xlu0 %1344
        %1346 = vrot.lane.b32.xlu0 %v1339, 112
        %v1347 = vpop.permute.xlu0 %1346
        %1348 = vrot.lane.b32.xlu0 %v1340, 112
        %v1349 = vpop.permute.xlu0 %1348
        %v1350 = vsel %vm498, %v1345, %v1347
        %v1351 = vsel %vm498, %v1347, %v1349
        %v1355 = vadd.f32 %v1332, %v1350
        %v1356 = vadd.f32 %v1333, %v1351
        %v1357 = vadd.f32 %v1334, %v1349
        %v1358 = vstv %s448
        %v1359 = vstv %s399
        %v1360 = vsel %vm379, %v1358, %v1359
        %v1361 = vmul.f32 %v1360, %v375
        %v1362 = vmul.f32 %v1360, %v371
        %v1363 = vmul.f32 %v1360, %v376
        %1367 = vrot.lane.b32.xlu0 %v1361, 96
        %v1368 = vpop.permute.xlu0 %1367
        %1369 = vrot.lane.b32.xlu0 %v1362, 96
        %v1370 = vpop.permute.xlu0 %1369
        %1371 = vrot.lane.b32.xlu0 %v1363, 96
        %v1372 = vpop.permute.xlu0 %1371
        %v1373 = vsel %vm520, %v1368, %v1370
        %v1374 = vsel %vm520, %v1370, %v1372
        %v1378 = vadd.f32 %v1355, %v1373
        %v1379 = vadd.f32 %v1356, %v1374
        %v1380 = vadd.f32 %v1357, %v1372
        %v1381 = vstv %s455
        %v1382 = vstv %s406
        %v1383 = vsel %vm379, %v1381, %v1382
        %v1384 = vmul.f32 %v1383, %v375
        %v1385 = vmul.f32 %v1383, %v371
        %v1386 = vmul.f32 %v1383, %v376
        %1390 = vrot.lane.b32.xlu0 %v1384, 80
        %v1391 = vpop.permute.xlu0 %1390
        %1392 = vrot.lane.b32.xlu0 %v1385, 80
        %v1393 = vpop.permute.xlu0 %1392
        %1394 = vrot.lane.b32.xlu0 %v1386, 80
        %v1395 = vpop.permute.xlu0 %1394
        %v1396 = vsel %vm542, %v1391, %v1393
        %v1397 = vsel %vm542, %v1393, %v1395
        %v1401 = vadd.f32 %v1378, %v1396
        %v1402 = vadd.f32 %v1379, %v1397
        %v1403 = vadd.f32 %v1380, %v1395
        %v1404 = vstv %s462
        %v1405 = vstv %s413
        %v1406 = vsel %vm379, %v1404, %v1405
        %v1407 = vmul.f32 %v1406, %v375
        %v1408 = vmul.f32 %v1406, %v371
        %v1409 = vmul.f32 %v1406, %v376
        %1413 = vrot.lane.b32.xlu0 %v1407, 64
        %v1414 = vpop.permute.xlu0 %1413
        %1415 = vrot.lane.b32.xlu0 %v1408, 64
        %v1416 = vpop.permute.xlu0 %1415
        %1417 = vrot.lane.b32.xlu0 %v1409, 64
        %v1418 = vpop.permute.xlu0 %1417
        %v1419 = vsel %vm564, %v1414, %v1416
        %v1420 = vsel %vm564, %v1416, %v1418
        %v1424 = vadd.f32 %v1401, %v1419
        %v1425 = vadd.f32 %v1402, %v1420
        %v1426 = vadd.f32 %v1403, %v1418
        %v1427 = vstv %s469
        %v1428 = vstv %s420
        %v1429 = vsel %vm379, %v1427, %v1428
        %v1430 = vmul.f32 %v1429, %v375
        %v1431 = vmul.f32 %v1429, %v371
        %v1432 = vmul.f32 %v1429, %v376
        %1436 = vrot.lane.b32.xlu0 %v1430, 48
        %v1437 = vpop.permute.xlu0 %1436
        %1438 = vrot.lane.b32.xlu0 %v1431, 48
        %v1439 = vpop.permute.xlu0 %1438
        %1440 = vrot.lane.b32.xlu0 %v1432, 48
        %v1441 = vpop.permute.xlu0 %1440
        %v1442 = vsel %vm586, %v1437, %v1439
        %v1443 = vsel %vm586, %v1439, %v1441
        %v1447 = vadd.f32 %v1424, %v1442
        %v1448 = vadd.f32 %v1425, %v1443
        %v1449 = vadd.f32 %v1426, %v1441
        %v1450 = vstv %s476
        %v1451 = vstv %s427
        %v1452 = vsel %vm379, %v1450, %v1451
        %v1453 = vmul.f32 %v1452, %v375
        %v1454 = vmul.f32 %v1452, %v371
        %v1455 = vmul.f32 %v1452, %v376
        %1459 = vrot.lane.b32.xlu0 %v1453, 32
        %v1460 = vpop.permute.xlu0 %1459
        %1461 = vrot.lane.b32.xlu0 %v1454, 32
        %v1462 = vpop.permute.xlu0 %1461
        %1463 = vrot.lane.b32.xlu0 %v1455, 32
        %v1464 = vpop.permute.xlu0 %1463
        %v1465 = vsel %vm608, %v1460, %v1462
        %v1466 = vsel %vm608, %v1462, %v1464
        %v1470 = vadd.f32 %v1447, %v1465
        %v1471 = vadd.f32 %v1448, %v1466
        %v1472 = vadd.f32 %v1449, %v1464
        %s1473 = scalar_lea.vmem [#allocation8], 5
        %v1474 = vld [vmem:[%s1473] ss:$8 sm:$0x3]
        %v1476 = vlaneseq
        %v1477 = vshrl.u32 %v1476, 7
        %v1478 = vsub.s32 0, %v1477
        %v1479 = vrot.slane %v1474, %v1478
        %v1480 = vlaneseq
        %v1481 = vshrl.u32 %v1480, 7
        %v1482 = vsub.s32 1, %v1481
        %v1483 = vrot.slane %v1474, %v1482
        %1489 = vrot.lane.b32.xlu0 %v1470, 123
        %v1490 = vpop.permute.xlu0 %1489
        %1491 = vrot.lane.b32.xlu0 %v1471, 123
        %v1492 = vpop.permute.xlu0 %1491
        %1493 = vrot.lane.b32.xlu0 %v1472, 123
        %v1494 = vpop.permute.xlu0 %1493
        %vm1495 = vcmask 1006592
        %v1496 = vsel %vm1495, %v1490, %v1492
        %v1497 = vsel %vm1495, %v1492, %v1494
        %v1500 = vmul.f32 %v1479, %v1496
        %v1501 = vmul.f32 %v1483, %v1497
        %v1502 = vadd.f32 %v1327, %v1500
        %v1503 = vadd.f32 %v1328, %v1501
        %v1504 = vstv %s435
        %v1505 = vstv %s386
        %v1506 = vsel %vm379, %v1504, %v1505
        %v1507 = vmul.f32 %v1506, %v375
        %v1508 = vmul.f32 %v1506, %v371
        %v1509 = vmul.f32 %v1506, %v376
        %v1510 = vstv %s442
        %v1511 = vstv %s393
        %v1512 = vsel %vm379, %v1510, %v1511
        %v1513 = vmul.f32 %v1512, %v375
        %v1514 = vmul.f32 %v1512, %v371
        %v1515 = vmul.f32 %v1512, %v376
        %1519 = vrot.lane.b32.xlu0 %v1513, 112
        %v1520 = vpop.permute.xlu0 %1519
        %1521 = vrot.lane.b32.xlu0 %v1514, 112
        %v1522 = vpop.permute.xlu0 %1521
        %1523 = vrot.lane.b32.xlu0 %v1515, 112
        %v1524 = vpop.permute.xlu0 %1523
        %v1525 = vsel %vm498, %v1520, %v1522
        %v1526 = vsel %vm498, %v1522, %v1524
        %v1530 = vadd.f32 %v1507, %v1525
        %v1531 = vadd.f32 %v1508, %v1526
        %v1532 = vadd.f32 %v1509, %v1524
        %v1533 = vstv %s449
        %v1534 = vstv %s400
        %v1535 = vsel %vm379, %v1533, %v1534
        %v1536 = vmul.f32 %v1535, %v375
        %v1537 = vmul.f32 %v1535, %v371
        %v1538 = vmul.f32 %v1535, %v376
        %1542 = vrot.lane.b32.xlu0 %v1536, 96
        %v1543 = vpop.permute.xlu0 %1542
        %1544 = vrot.lane.b32.xlu0 %v1537, 96
        %v1545 = vpop.permute.xlu0 %1544
        %1546 = vrot.lane.b32.xlu0 %v1538, 96
        %v1547 = vpop.permute.xlu0 %1546
        %v1548 = vsel %vm520, %v1543, %v1545
        %v1549 = vsel %vm520, %v1545, %v1547
        %v1553 = vadd.f32 %v1530, %v1548
        %v1554 = vadd.f32 %v1531, %v1549
        %v1555 = vadd.f32 %v1532, %v1547
        %v1556 = vstv %s456
        %v1557 = vstv %s407
        %v1558 = vsel %vm379, %v1556, %v1557
        %v1559 = vmul.f32 %v1558, %v375
        %v1560 = vmul.f32 %v1558, %v371
        %v1561 = vmul.f32 %v1558, %v376
        %1565 = vrot.lane.b32.xlu0 %v1559, 80
        %v1566 = vpop.permute.xlu0 %1565
        %1567 = vrot.lane.b32.xlu0 %v1560, 80
        %v1568 = vpop.permute.xlu0 %1567
        %1569 = vrot.lane.b32.xlu0 %v1561, 80
        %v1570 = vpop.permute.xlu0 %1569
        %v1571 = vsel %vm542, %v1566, %v1568
        %v1572 = vsel %vm542, %v1568, %v1570
        %v1576 = vadd.f32 %v1553, %v1571
        %v1577 = vadd.f32 %v1554, %v1572
        %v1578 = vadd.f32 %v1555, %v1570
        %v1579 = vstv %s463
        %v1580 = vstv %s414
        %v1581 = vsel %vm379, %v1579, %v1580
        %v1582 = vmul.f32 %v1581, %v375
        %v1583 = vmul.f32 %v1581, %v371
        %v1584 = vmul.f32 %v1581, %v376
        %1588 = vrot.lane.b32.xlu0 %v1582, 64
        %v1589 = vpop.permute.xlu0 %1588
        %1590 = vrot.lane.b32.xlu0 %v1583, 64
        %v1591 = vpop.permute.xlu0 %1590
        %1592 = vrot.lane.b32.xlu0 %v1584, 64
        %v1593 = vpop.permute.xlu0 %1592
        %v1594 = vsel %vm564, %v1589, %v1591
        %v1595 = vsel %vm564, %v1591, %v1593
        %v1599 = vadd.f32 %v1576, %v1594
        %v1600 = vadd.f32 %v1577, %v1595
        %v1601 = vadd.f32 %v1578, %v1593
        %v1602 = vstv %s470
        %v1603 = vstv %s421
        %v1604 = vsel %vm379, %v1602, %v1603
        %v1605 = vmul.f32 %v1604, %v375
        %v1606 = vmul.f32 %v1604, %v371
        %v1607 = vmul.f32 %v1604, %v376
        %1611 = vrot.lane.b32.xlu0 %v1605, 48
        %v1612 = vpop.permute.xlu0 %1611
        %1613 = vrot.lane.b32.xlu0 %v1606, 48
        %v1614 = vpop.permute.xlu0 %1613
        %1615 = vrot.lane.b32.xlu0 %v1607, 48
        %v1616 = vpop.permute.xlu0 %1615
        %v1617 = vsel %vm586, %v1612, %v1614
        %v1618 = vsel %vm586, %v1614, %v1616
        %v1622 = vadd.f32 %v1599, %v1617
        %v1623 = vadd.f32 %v1600, %v1618
        %v1624 = vadd.f32 %v1601, %v1616
        %v1625 = vstv %s477
        %v1626 = vstv %s428
        %v1627 = vsel %vm379, %v1625, %v1626
        %v1628 = vmul.f32 %v1627, %v375
        %v1629 = vmul.f32 %v1627, %v371
        %v1630 = vmul.f32 %v1627, %v376
        %1634 = vrot.lane.b32.xlu0 %v1628, 32
        %v1635 = vpop.permute.xlu0 %1634
        %1636 = vrot.lane.b32.xlu0 %v1629, 32
        %v1637 = vpop.permute.xlu0 %1636
        %1638 = vrot.lane.b32.xlu0 %v1630, 32
        %v1639 = vpop.permute.xlu0 %1638
        %v1640 = vsel %vm608, %v1635, %v1637
        %v1641 = vsel %vm608, %v1637, %v1639
        %v1645 = vadd.f32 %v1622, %v1640
        %v1646 = vadd.f32 %v1623, %v1641
        %v1647 = vadd.f32 %v1624, %v1639
        %s1648 = scalar_lea.vmem [#allocation8], 6
        %v1649 = vld [vmem:[%s1648] ss:$8 sm:$0x3]
        %v1651 = vlaneseq
        %v1652 = vshrl.u32 %v1651, 7
        %v1653 = vsub.s32 0, %v1652
        %v1654 = vrot.slane %v1649, %v1653
        %v1655 = vlaneseq
        %v1656 = vshrl.u32 %v1655, 7
        %v1657 = vsub.s32 1, %v1656
        %v1658 = vrot.slane %v1649, %v1657
        %1664 = vrot.lane.b32.xlu0 %v1645, 122
        %v1665 = vpop.permute.xlu0 %1664
        %1666 = vrot.lane.b32.xlu0 %v1646, 122
        %v1667 = vpop.permute.xlu0 %1666
        %1668 = vrot.lane.b32.xlu0 %v1647, 122
        %v1669 = vpop.permute.xlu0 %1668
        %vm1670 = vcmask 998400
        %v1671 = vsel %vm1670, %v1665, %v1667
        %v1672 = vsel %vm1670, %v1667, %v1669
        %v1675 = vmul.f32 %v1654, %v1671
        %v1676 = vmul.f32 %v1658, %v1672
        %v1677 = vadd.f32 %v1502, %v1675
        %v1678 = vadd.f32 %v1503, %v1676
        %v1681 = vrot.slane %v1677, 1
        %v1682 = vrot.slane %v1678, 1
        %v1685 = vadd.f32 %v1677, %v1681
        %v1686 = vadd.f32 %v1678, %v1682
        %v1687 = vxor.u32 %v1685, 2147483648
        %v1688 = vxor.u32 %v1686, 2147483648
        %v1689 = vmul.f32 %v1687, 1.442695
        %v1690 = vpow.pop %v1689
        %v1691 = vmul.f32 %v1688, 1.442695
        %v1692 = vpow.pop %v1691
        %v1693 = vadd.f32 %v1690, 1.0
        %v1694 = vadd.f32 %v1692, 1.0
        %v1695 = vrcp.pop %v1693
        %v1696 = vmul.f32 1.0, %v1695
        %v1697 = vrcp.pop %v1694
        %v1698 = vmul.f32 1.0, %v1697
        %v1699 = vlaneseq
        %v1700 = vshrl.u32 %v1699, 7
        %v1701 = vsub.s32 0, %v1700
        %v1702 = vrot.slane %v1696, %v1701
        %v1703 = vlaneseq
        %v1704 = vshrl.u32 %v1703, 7
        %v1705 = vsub.s32 0, %v1704
        %v1706 = vrot.slane %v1698, %v1705
        %v1709 = vcombine.low %v1702, %v1706
        %v1711 = vmul.f32 %v326, %v1709
        %1712 = vst [vmem:[%s279] sm:$0xff] %v1711
        %s1713 = sand.u32 %s142, 1
        %s1714 = scalar_lea.sflag [#allocation4], %s1713
        %s1715 = sand.u32 %s142, 1
        %s1716 = smul.addr %s1715, 8
        %s1717 = scalar_lea.vmem [#allocation10], %s1716
        // Predicated region
        $region57: #{tpu_custom_call.1} parent=39 // pred_check
          %p1718 = pneg %p152
        $region58: #{tpu_custom_call.1} parent=39 // pred_check_branch
          %1720 = sbr.rel (%p1718) target = $region60
        $region59: #{tpu_custom_call.1} parent=39 // pred_region
          %s1722 = ssub.s32 128, 128
          %1723 = vsyncadd %s1714, %s1722
          %s1724 = smul.addr %s24, 2
          %s1725 = smul.addr %s1724, 64
          %s1726 = scalar_lea.hbm %s5, %s1725
          %s1728 = sshll.u32 %s1717, 4
          %s1729 = int_to_ptr.vmem [resolvable:$true] %s1728
          %1731 = dma.vmem_to_hbm [thread:$0]  %s1729, 128, %s1726, %s1714
        $region60: #{tpu_custom_call.1} parent=39 // pred_fallthru
          _
      $region40: #{tpu_custom_call.1} parent=5 // pred_fallthru
        _
      %p1732 = scmp.le.s32.totalorder 2, %s19
      // Predicated region
      $region61: #{tpu_custom_call.1} parent=5 // pred_check
        %p1733 = pneg %p1732
      $region62: #{tpu_custom_call.1} parent=5 // pred_check_branch
        %1735 = sbr.rel (%p1733) target = $region64
      $region63: #{tpu_custom_call.1} parent=5 // pred_region
        %s1736 = ssub.s32 %s19, 2
        // Predicated region
        $region65: #{tpu_custom_call.1} parent=63 // pred_check
          %p1737 = pneg %p158
        $region66: #{tpu_custom_call.1} parent=63 // pred_check_branch
          %1739 = sbr.rel (%p1737) target = $region68
        $region67: #{tpu_custom_call.1} parent=63 // pred_region
          %s1740 = sand.u32 %s143, 1
          %s1741 = scalar_lea.sflag [#allocation4], %s1740
          %s1742 = sand.u32 %s143, 1
          %s1743 = smul.addr %s1742, 8
          %s1744 = scalar_lea.vmem [#allocation10], %s1743
          %1745 = dma.done %s1741, 128
        $region68: #{tpu_custom_call.1} parent=63 // pred_fallthru
          _
      $region64: #{tpu_custom_call.1} parent=5 // pred_fallthru
        _
    $region6: #{tpu_custom_call.1} parent=1 // loop_footer
      %s23 = sadd.s32 1, %s19
    $region7: #{tpu_custom_call.1} parent=1 // loop_footer_branch
      %18 = sbr.rel target = $region3
    $region8: #{tpu_custom_call.1} parent=1 // loop_exit
      _
    %1746 = vsyncpa [#allocation3], 1
    %s1747 = scalar_lea.sflag [#allocation3], 1
    %1748 = vsyncpa %s1747, 1
    %1749 = vsyncpa [#allocation7], 1
    %1750 = vsyncpa [#allocation4], 1
    %s1751 = scalar_lea.sflag [#allocation4], 1
    %1752 = vsyncpa %s1751, 1
    %1753 = vsyncpa [#allocation5], 1
    %s1754 = scalar_lea.sflag [#allocation5], 1
    %1755 = vsyncpa %s1754, 1

</llo_original>
